<compile_context>
chip_gen: v6e
topology: v6e:2x2x1
jax: 0.10.0
libtpu: 0.0.40
codegen_flags: <defaults>
</compile_context>

<pallas_src>
import functools
import math
from types import SimpleNamespace

import jax
import jax.numpy as jnp
from jax.experimental import pallas as pl
from jax.experimental.pallas import tpu as pltpu

# bf16 operands for the conv MXU matmuls (accumulation, BN stats, softmax stay in f32).
_CONV_MM_DTYPE = jnp.bfloat16


# ---------------------------------------------------------------------------
# Kernel 1: fused 3x3 "same" Conv2d (no bias) + BatchNorm2d (training-mode
# batch statistics, as a freshly constructed torch module uses) + ReLU.
#
# Restructured vs. the previous version:
#   * Cin > 1 layers: one matmul per kernel row (dh) with contraction K = 3*Cin,
#     built by concatenating the three dw-shifted slabs along the lane (channel)
#     axis.  The (B,H,W,3Cin) -> (B*H*W, 3Cin) reshape is tile-aligned when
#     num_mels % 8 == 0, so the 9 per-tap slice+reshape relayout copies (and the
#     9 narrow K=Cin matmuls) of the old kernel disappear.
#   * Cin == 1 (first layer of each stack): K=1 matmuls waste the MXU, so the 9
#     taps are done as VPU broadcast multiply-adds instead.
#   * Matmul operands are cast to bf16 (f32 accumulation via preferred_element_type).
#
# BatchNorm needs per-channel statistics over the full (B, H, W) extent, so the whole
# (small) batch is processed in one grid=() invocation.
# TODO(synk): for production channel counts / sequence lengths this kernel should be
#   time-tiled with a 1-row halo and a two-pass (sum/sumsq grid-accumulator) BN, which
#   would also allow a "parallel" grid axis for v7x megacore; unnecessary at these shapes.
# ---------------------------------------------------------------------------
def _conv_bn_relu_kernel(xp_ref, w_ref, gamma_ref, beta_ref, out_ref, *, mm_dtype):
    B, Hp, Wp, Cin = xp_ref.shape
    H, W = Hp - 2, Wp - 2
    Cout = out_ref.shape[-1]
    n = B * H * W
    xp = xp_ref[...]                                   # (B, H+2, W+2, Cin), zero-padded
    acc = jnp.zeros((n, Cout), jnp.float32)
    if Cin == 1:
        # First layer: 9 VPU broadcast FMAs instead of degenerate K=1 MXU ops.
        w = w_ref[...]                                 # (3, 3, Cout)
        for dh in range(3):
            xs = xp[:, dh:dh + H]                      # free leading-dim slice
            for dw in range(3):
                tap = xs[:, :, dw:dw + W, :].reshape(n, 1)
                acc = acc + tap * w[dh, dw][None, :]
    else:
        w = w_ref[...].astype(mm_dtype)                # (3, 3*Cin, Cout)
        for dh in range(3):
            xs = xp[:, dh:dh + H]                      # (B, H, W+2, Cin)
            patch = jnp.concatenate(                   # lane-concat of dw shifts
                [xs[:, :, dw:dw + W, :] for dw in range(3)], axis=-1)  # (B,H,W,3Cin)
            acc = acc + jnp.dot(patch.reshape(n, 3 * Cin).astype(mm_dtype), w[dh],
                                preferred_element_type=jnp.float32)
    # BatchNorm2d, training mode: biased batch stats per channel over B*H*W (f32).
    mean = jnp.mean(acc, axis=0, keepdims=True)
    var = jnp.mean((acc - mean) ** 2, axis=0, keepdims=True)
    y = (acc - mean) * jax.lax.rsqrt(var + 1e-5)
    y = y * gamma_ref[...] + beta_ref[...]
    y = jnp.maximum(y, 0.0)                            # ReLU
    out_ref[...] = y.reshape(B, H, W, Cout)


def conv_bn_relu(x, w, gamma, beta, mm_dtype=_CONV_MM_DTYPE):
    B, H, W, Cin = x.shape
    Cout = w.shape[-1]
    # TODO(synk): fold the 1-pixel halo / window offsets into the kernel via index_map
    # + scalar prefetch instead of an XLA-side pad (extra HBM pass of the activation).
    xp = jnp.pad(x, ((0, 0), (1, 1), (1, 1), (0, 0)))
    wk = w.reshape(3, 3, Cout) if Cin == 1 else w.reshape(3, 3 * Cin, Cout)
    return pl.pallas_call(
        functools.partial(_conv_bn_relu_kernel, mm_dtype=mm_dtype),
        out_shape=jax.ShapeDtypeStruct((B, H, W, Cout), jnp.float32),
        in_specs=[pl.BlockSpec(memory_space=pltpu.MemorySpace.VMEM)] * 4,
        out_specs=pl.BlockSpec(memory_space=pltpu.MemorySpace.VMEM),
        compiler_params=pltpu.CompilerParams(vmem_limit_bytes=32 * 1024 * 1024),
    )(xp, wk, gamma, beta)


# ---------------------------------------------------------------------------
# Kernel 2: fused Linear(C*num_mels -> 32) + multi-head self-attention (ESPnet
# MultiHeadedAttention, no mask) + head (final Linear(32->1), mean over time, and
# mean over time of max/min over the feature dim).
#
# One invocation per (layer, window, input) processes the whole batch and replaces the
# previous dense / mha / head chain (3 launches + 3 (B,T,32) HBM round trips).  Q/K/V
# projections are one fused (B*T,32)@(32,96) matmul; attention is batched over B via
# einsum; the per-head 16-wide output projections are merged into a single
# (B*T,32)@(32,32) matmul on the concatenated context; the head uses linearity
# mean_T(y @ wf + bf) == mean_T(y) @ wf + bf so no N=1 MXU ops remain.
# ---------------------------------------------------------------------------
def _dense_mha_head_kernel(h_ref, dw_ref, db_ref, wqkv_ref, bqkv_ref, wo_ref, bo_ref,
                           wf_ref, bf_ref, final_ref, minmax_ref,
                           *, num_heads, is_target):
    B, T, CM = h_ref.shape
    D = dw_ref.shape[-1]                               # att_dim (32)
    dk = D // num_heads
    n = B * T
    x = h_ref[...].reshape(n, CM)
    d = jnp.dot(x, dw_ref[...], preferred_element_type=jnp.float32) + db_ref[...]
    qkv = jnp.dot(d, wqkv_ref[...], preferred_element_type=jnp.float32) + bqkv_ref[...]
    qkv = qkv.reshape(B, T, 3 * D)
    scale = 1.0 / math.sqrt(dk)
    ctx_heads = []
    for hh in range(num_heads):                        # static unroll, few heads
        qh = qkv[:, :, hh * dk:(hh + 1) * dk]
        kh = qkv[:, :, D + hh * dk:D + (hh + 1) * dk]
        vh = qkv[:, :, 2 * D + hh * dk:2 * D + (hh + 1) * dk]
        s = jnp.einsum('btd,bsd->bts', qh, kh,
                       preferred_element_type=jnp.float32) * scale
        s = s - jnp.max(s, axis=-1, keepdims=True)
        p = jnp.exp(s)
        p = p / jnp.sum(p, axis=-1, keepdims=True)
        # TODO(synk): attention dropout (transformer_enc_dropout_rate) treated as
        # identity (eval mode); torch dropout RNG is not reproducible here.
        ctx_heads.append(jnp.einsum('bts,bsd->btd', p, vh,
                                    preferred_element_type=jnp.float32))
    ctx = jnp.concatenate(ctx_heads, axis=-1).reshape(n, D)
    y = (jnp.dot(ctx, wo_ref[...], preferred_element_type=jnp.float32)
         + bo_ref[...]).reshape(B, T, D)
    # Head epilogue.
    ymean = jnp.mean(y, axis=1)                        # (B, D)
    final_ref[...] = (jnp.sum(ymean * wf_ref[...], axis=-1, keepdims=True)
                      + bf_ref[...])                   # (B, 1)
    mm = jnp.min(y, axis=-1) if is_target else jnp.max(y, axis=-1)   # (B, T)
    minmax_ref[...] = jnp.mean(mm, axis=-1, keepdims=True)           # (B, 1)


def dense_mha_head(h, params, layer, num_heads, is_target):
    B = h.shape[0]
    final, minmax = pl.pallas_call(
        functools.partial(_dense_mha_head_kernel, num_heads=num_heads,
                          is_target=is_target),
        out_shape=(jax.ShapeDtypeStruct((B, 1), jnp.float32),
                   jax.ShapeDtypeStruct((B, 1), jnp.float32)),
        in_specs=[pl.BlockSpec(memory_space=pltpu.MemorySpace.VMEM)] * 9,
        out_specs=(pl.BlockSpec(memory_space=pltpu.MemorySpace.VMEM),
                   pl.BlockSpec(memory_space=pltpu.MemorySpace.VMEM)),
        compiler_params=pltpu.CompilerParams(vmem_limit_bytes=32 * 1024 * 1024),
    )(h, params['dense_w'][layer], params['dense_b'][layer],
      params['mha_wqkv'], params['mha_bqkv'], params['mha_wo'], params['mha_bo'],
      params['final_w'], params['final_b'])
    return final[:, 0], minmax[:, 0]


# ---------------------------------------------------------------------------
# Parameters (deterministic, synthetic — shapes follow the module __init__).
# ---------------------------------------------------------------------------
def init_params(key, channels, num_mels, att_dim=32):
    p = {'conv_w': [], 'bn_gamma': [], 'bn_beta': [], 'dense_w': [], 'dense_b': []}
    gain = math.sqrt(2.0 / (1.0 + 0.1 ** 2))      # calculate_gain('leaky_relu', 0.1)
    for C in channels:
        ws, gs, bs = [], [], []
        cin = 1
        for _ in range(3):
            key, sub = jax.random.split(key)
            fan_in, fan_out = cin * 9, C * 9
            a = gain * math.sqrt(6.0 / (fan_in + fan_out))   # xavier_uniform_
            ws.append(jax.random.uniform(sub, (3, 3, cin, C), minval=-a, maxval=a,
                                         dtype=jnp.float32))
            gs.append(jnp.ones((1, C), jnp.float32))          # BN weight init
            bs.append(jnp.zeros((1, C), jnp.float32))         # BN bias init
            cin = C
        p['conv_w'].append(ws)
        p['bn_gamma'].append(gs)
        p['bn_beta'].append(bs)
        cm = C * num_mels
        key, s1, s2 = jax.random.split(key, 3)
        bound = 1.0 / math.sqrt(cm)
        w_cm = jax.random.uniform(s1, (cm, att_dim), minval=-bound, maxval=bound,
                                  dtype=jnp.float32)          # torch (c*M + m) row order
        # Permute rows once so kernels consume the natural (m*C + c) flatten of the
        # NHWC conv output — removes the per-call XLA transpose before the dense layer.
        w_mc = w_cm.reshape(C, num_mels, att_dim).transpose(1, 0, 2).reshape(cm, att_dim)
        p['dense_w'].append(w_mc)
        p['dense_b'].append(jax.random.uniform(s2, (1, att_dim), minval=-bound,
                                               maxval=bound, dtype=jnp.float32))
    bound = 1.0 / math.sqrt(att_dim)
    qkv_w, qkv_b = [], []
    for _ in ('q', 'k', 'v'):
        key, s1, s2 = jax.random.split(key, 3)
        qkv_w.append(jax.random.uniform(s1, (att_dim, att_dim), minval=-bound,
                                        maxval=bound, dtype=jnp.float32))
        qkv_b.append(jax.random.uniform(s2, (1, att_dim), minval=-bound,
                                        maxval=bound, dtype=jnp.float32))
    p['mha_wqkv'] = jnp.concatenate(qkv_w, axis=1)            # (att_dim, 3*att_dim)
    p['mha_bqkv'] = jnp.concatenate(qkv_b, axis=1)            # (1, 3*att_dim)
    key, s1, s2 = jax.random.split(key, 3)
    p['mha_wo'] = jax.random.uniform(s1, (att_dim, att_dim), minval=-bound,
                                     maxval=bound, dtype=jnp.float32)
    p['mha_bo'] = jax.random.uniform(s2, (1, att_dim), minval=-bound, maxval=bound,
                                     dtype=jnp.float32)
    key, s1, s2 = jax.random.split(key, 3)
    p['final_w'] = jax.random.uniform(s1, (1, att_dim), minval=-bound, maxval=bound,
                                      dtype=jnp.float32)      # torch Linear(32,1).weight
    p['final_b'] = jax.random.uniform(s2, (1, 1), minval=-bound, maxval=bound,
                                      dtype=jnp.float32)
    return p


# ---------------------------------------------------------------------------
# Forward (Calculate_Discrim.forward + discriminator_factory semantics).
# ---------------------------------------------------------------------------
def calculate_discrim_forward(params, hp, gen_output, target_output, olens,
                              window_frames):
    B, T, M = gen_output.shape
    # make_non_pad_mask(olens).unsqueeze(-1) ; masked_fill(mask==0, 0.0)
    mask = (jnp.arange(T)[None, :] < olens[:, None]).astype(gen_output.dtype)
    gen = gen_output * mask[..., None]
    tgt = target_output * mask[..., None]

    def factory(x, layer, is_target):
        # x: (B, T', M) -> conv input (B, T', M, 1)   [torch: (B, 1, T', M)]
        h = x[..., None]
        for i in range(3):
            h = conv_bn_relu(h, params['conv_w'][layer][i],
                             params['bn_gamma'][layer][i],
                             params['bn_beta'][layer][i])
        # TODO(synk): Dropout(dropout_rate) after the conv stack treated as identity.
        Bc, Tc, Mc, Cc = h.shape
        # Natural (m*C + c) flatten; equivalence with torch's transpose+view is handled
        # by the dense_w row permutation done at init (free HBM reshape here).
        h = h.reshape(Bc, Tc, Mc * Cc)
        final, minmax = dense_mha_head(h, params, layer, hp.aheads, is_target)
        if hp.is_partial_refine:
            return [final, minmax]
        return [final]

    def run(x, is_target):
        out = factory(x, 0, is_target)
        for li, (s, e) in enumerate(window_frames, start=1):
            # TODO(synk): window slicing kept in XLA; could be folded into the conv
            # kernel via scalar-prefetched start offsets.
            new = factory(x[:, s:e, :], li, is_target)
            out = [a + b for a, b in zip(out, new)]
        return out

    return run(gen, False), run(tgt, True)


if __name__ == "__main__":
    hp = SimpleNamespace(num_mels=8, aheads=2,
                         transformer_enc_dropout_rate=0.1,
                         is_partial_refine=True)
    B, T = 2, 16
    channels = [16, 8, 4]          # scaled-down stand-ins for [128, 64, 32]
    window_sizes = [10, 6]         # scaled-down stand-ins for [100, 50]

    key = jax.random.PRNGKey(0)
    k_gen, k_tgt, k_par, k_win = jax.random.split(key, 4)
    gen = jax.random.normal(k_gen, (B, T, hp.num_mels), jnp.float32)
    tgt = jax.random.normal(k_tgt, (B, T, hp.num_mels), jnp.float32)
    olens = jnp.array([16, 12], jnp.int32)

    params = init_params(k_par, channels, hp.num_mels, att_dim=32)

    # Deterministic stand-in for torch.distributions.Uniform window sampling.
    frames = []
    for wk, win in zip(jax.random.split(k_win, len(window_sizes)), window_sizes):
        maxv = 1 if T - win < 1 else T - win
        start = int(jax.random.uniform(wk, (), minval=0.0, maxval=float(maxv)))
        end = start + win if start + win < T - 1 else T - 1
        frames.append((start, end))

    out_gen, out_tgt = calculate_discrim_forward(params, hp, gen, tgt, olens,
                                                 frames)
    jax.block_until_ready((out_gen, out_tgt))
    print("KERNEL_OK")
</pallas_src>

<mosaic_0001>
module attributes {stable_mosaic.version = 11 : i64} {
  func.func @_conv_bn_relu_kernel(%arg0: memref<2x18x10x1xf32, #tpu.memory_space<vmem>>, %arg1: memref<3x3x16xf32, #tpu.memory_space<vmem>>, %arg2: memref<1x16xf32, #tpu.memory_space<vmem>>, %arg3: memref<1x16xf32, #tpu.memory_space<vmem>>, %arg4: memref<2x16x8x16xf32, #tpu.memory_space<vmem>>) attributes {dimension_semantics = [], scalar_prefetch = 0 : i64, scratch_operands = 0 : i64, tpu.core_type = #tpu.core_type<tc>} {
    %c0 = arith.constant 0 : index
    %c0_0 = arith.constant 0 : index
    %c0_1 = arith.constant 0 : index
    %c0_2 = arith.constant 0 : index
    %0 = vector.load %arg0[%c0, %c0_0, %c0_1, %c0_2] : memref<2x18x10x1xf32, #tpu.memory_space<vmem>>, vector<2x18x10x1xf32>
    %cst = arith.constant 0.000000e+00 : f32
    %1 = vector.broadcast %cst : f32 to vector<256x16xf32>
    %c0_3 = arith.constant 0 : index
    %c0_4 = arith.constant 0 : index
    %c0_5 = arith.constant 0 : index
    %2 = vector.load %arg1[%c0_3, %c0_4, %c0_5] : memref<3x3x16xf32, #tpu.memory_space<vmem>>, vector<3x3x16xf32>
    %3 = vector.extract_strided_slice %0 {offsets = [0, 0, 0, 0], sizes = [2, 16, 10, 1], strides = [1, 1, 1, 1]} : vector<2x18x10x1xf32> to vector<2x16x10x1xf32>
    %4 = vector.extract_strided_slice %3 {offsets = [0, 0, 0, 0], sizes = [2, 16, 8, 1], strides = [1, 1, 1, 1]} : vector<2x16x10x1xf32> to vector<2x16x8x1xf32>
    %5 = vector.shape_cast %4 : vector<2x16x8x1xf32> to vector<256x1xf32>
    %6 = vector.extract_strided_slice %2 {offsets = [0, 0, 0], sizes = [1, 1, 16], strides = [1, 1, 1]} : vector<3x3x16xf32> to vector<1x1x16xf32>
    %7 = vector.shape_cast %6 : vector<1x1x16xf32> to vector<16xf32>
    %8 = vector.shape_cast %7 : vector<16xf32> to vector<1x16xf32>
    %9 = vector.broadcast %5 : vector<256x1xf32> to vector<256x16xf32>
    %10 = vector.broadcast %8 : vector<1x16xf32> to vector<256x16xf32>
    %11 = arith.mulf %9, %10 : vector<256x16xf32>
    %12 = arith.addf %1, %11 : vector<256x16xf32>
    %13 = vector.extract_strided_slice %3 {offsets = [0, 0, 1, 0], sizes = [2, 16, 8, 1], strides = [1, 1, 1, 1]} : vector<2x16x10x1xf32> to vector<2x16x8x1xf32>
    %14 = vector.shape_cast %13 : vector<2x16x8x1xf32> to vector<256x1xf32>
    %15 = vector.extract_strided_slice %2 {offsets = [0, 1, 0], sizes = [1, 1, 16], strides = [1, 1, 1]} : vector<3x3x16xf32> to vector<1x1x16xf32>
    %16 = vector.shape_cast %15 : vector<1x1x16xf32> to vector<16xf32>
    %17 = vector.shape_cast %16 : vector<16xf32> to vector<1x16xf32>
    %18 = vector.broadcast %14 : vector<256x1xf32> to vector<256x16xf32>
    %19 = vector.broadcast %17 : vector<1x16xf32> to vector<256x16xf32>
    %20 = arith.mulf %18, %19 : vector<256x16xf32>
    %21 = arith.addf %12, %20 : vector<256x16xf32>
    %22 = vector.extract_strided_slice %3 {offsets = [0, 0, 2, 0], sizes = [2, 16, 8, 1], strides = [1, 1, 1, 1]} : vector<2x16x10x1xf32> to vector<2x16x8x1xf32>
    %23 = vector.shape_cast %22 : vector<2x16x8x1xf32> to vector<256x1xf32>
    %24 = vector.extract_strided_slice %2 {offsets = [0, 2, 0], sizes = [1, 1, 16], strides = [1, 1, 1]} : vector<3x3x16xf32> to vector<1x1x16xf32>
    %25 = vector.shape_cast %24 : vector<1x1x16xf32> to vector<16xf32>
    %26 = vector.shape_cast %25 : vector<16xf32> to vector<1x16xf32>
    %27 = vector.broadcast %23 : vector<256x1xf32> to vector<256x16xf32>
    %28 = vector.broadcast %26 : vector<1x16xf32> to vector<256x16xf32>
    %29 = arith.mulf %27, %28 : vector<256x16xf32>
    %30 = arith.addf %21, %29 : vector<256x16xf32>
    %31 = vector.extract_strided_slice %0 {offsets = [0, 1, 0, 0], sizes = [2, 16, 10, 1], strides = [1, 1, 1, 1]} : vector<2x18x10x1xf32> to vector<2x16x10x1xf32>
    %32 = vector.extract_strided_slice %31 {offsets = [0, 0, 0, 0], sizes = [2, 16, 8, 1], strides = [1, 1, 1, 1]} : vector<2x16x10x1xf32> to vector<2x16x8x1xf32>
    %33 = vector.shape_cast %32 : vector<2x16x8x1xf32> to vector<256x1xf32>
    %34 = vector.extract_strided_slice %2 {offsets = [1, 0, 0], sizes = [1, 1, 16], strides = [1, 1, 1]} : vector<3x3x16xf32> to vector<1x1x16xf32>
    %35 = vector.shape_cast %34 : vector<1x1x16xf32> to vector<16xf32>
    %36 = vector.shape_cast %35 : vector<16xf32> to vector<1x16xf32>
    %37 = vector.broadcast %33 : vector<256x1xf32> to vector<256x16xf32>
    %38 = vector.broadcast %36 : vector<1x16xf32> to vector<256x16xf32>
    %39 = arith.mulf %37, %38 : vector<256x16xf32>
    %40 = arith.addf %30, %39 : vector<256x16xf32>
    %41 = vector.extract_strided_slice %31 {offsets = [0, 0, 1, 0], sizes = [2, 16, 8, 1], strides = [1, 1, 1, 1]} : vector<2x16x10x1xf32> to vector<2x16x8x1xf32>
    %42 = vector.shape_cast %41 : vector<2x16x8x1xf32> to vector<256x1xf32>
    %43 = vector.extract_strided_slice %2 {offsets = [1, 1, 0], sizes = [1, 1, 16], strides = [1, 1, 1]} : vector<3x3x16xf32> to vector<1x1x16xf32>
    %44 = vector.shape_cast %43 : vector<1x1x16xf32> to vector<16xf32>
    %45 = vector.shape_cast %44 : vector<16xf32> to vector<1x16xf32>
    %46 = vector.broadcast %42 : vector<256x1xf32> to vector<256x16xf32>
    %47 = vector.broadcast %45 : vector<1x16xf32> to vector<256x16xf32>
    %48 = arith.mulf %46, %47 : vector<256x16xf32>
    %49 = arith.addf %40, %48 : vector<256x16xf32>
    %50 = vector.extract_strided_slice %31 {offsets = [0, 0, 2, 0], sizes = [2, 16, 8, 1], strides = [1, 1, 1, 1]} : vector<2x16x10x1xf32> to vector<2x16x8x1xf32>
    %51 = vector.shape_cast %50 : vector<2x16x8x1xf32> to vector<256x1xf32>
    %52 = vector.extract_strided_slice %2 {offsets = [1, 2, 0], sizes = [1, 1, 16], strides = [1, 1, 1]} : vector<3x3x16xf32> to vector<1x1x16xf32>
    %53 = vector.shape_cast %52 : vector<1x1x16xf32> to vector<16xf32>
    %54 = vector.shape_cast %53 : vector<16xf32> to vector<1x16xf32>
    %55 = vector.broadcast %51 : vector<256x1xf32> to vector<256x16xf32>
    %56 = vector.broadcast %54 : vector<1x16xf32> to vector<256x16xf32>
    %57 = arith.mulf %55, %56 : vector<256x16xf32>
    %58 = arith.addf %49, %57 : vector<256x16xf32>
    %59 = vector.extract_strided_slice %0 {offsets = [0, 2, 0, 0], sizes = [2, 16, 10, 1], strides = [1, 1, 1, 1]} : vector<2x18x10x1xf32> to vector<2x16x10x1xf32>
    %60 = vector.extract_strided_slice %59 {offsets = [0, 0, 0, 0], sizes = [2, 16, 8, 1], strides = [1, 1, 1, 1]} : vector<2x16x10x1xf32> to vector<2x16x8x1xf32>
    %61 = vector.shape_cast %60 : vector<2x16x8x1xf32> to vector<256x1xf32>
    %62 = vector.extract_strided_slice %2 {offsets = [2, 0, 0], sizes = [1, 1, 16], strides = [1, 1, 1]} : vector<3x3x16xf32> to vector<1x1x16xf32>
    %63 = vector.shape_cast %62 : vector<1x1x16xf32> to vector<16xf32>
    %64 = vector.shape_cast %63 : vector<16xf32> to vector<1x16xf32>
    %65 = vector.broadcast %61 : vector<256x1xf32> to vector<256x16xf32>
    %66 = vector.broadcast %64 : vector<1x16xf32> to vector<256x16xf32>
    %67 = arith.mulf %65, %66 : vector<256x16xf32>
    %68 = arith.addf %58, %67 : vector<256x16xf32>
    %69 = vector.extract_strided_slice %59 {offsets = [0, 0, 1, 0], sizes = [2, 16, 8, 1], strides = [1, 1, 1, 1]} : vector<2x16x10x1xf32> to vector<2x16x8x1xf32>
    %70 = vector.shape_cast %69 : vector<2x16x8x1xf32> to vector<256x1xf32>
    %71 = vector.extract_strided_slice %2 {offsets = [2, 1, 0], sizes = [1, 1, 16], strides = [1, 1, 1]} : vector<3x3x16xf32> to vector<1x1x16xf32>
    %72 = vector.shape_cast %71 : vector<1x1x16xf32> to vector<16xf32>
    %73 = vector.shape_cast %72 : vector<16xf32> to vector<1x16xf32>
    %74 = vector.broadcast %70 : vector<256x1xf32> to vector<256x16xf32>
    %75 = vector.broadcast %73 : vector<1x16xf32> to vector<256x16xf32>
    %76 = arith.mulf %74, %75 : vector<256x16xf32>
    %77 = arith.addf %68, %76 : vector<256x16xf32>
    %78 = vector.extract_strided_slice %59 {offsets = [0, 0, 2, 0], sizes = [2, 16, 8, 1], strides = [1, 1, 1, 1]} : vector<2x16x10x1xf32> to vector<2x16x8x1xf32>
    %79 = vector.shape_cast %78 : vector<2x16x8x1xf32> to vector<256x1xf32>
    %80 = vector.extract_strided_slice %2 {offsets = [2, 2, 0], sizes = [1, 1, 16], strides = [1, 1, 1]} : vector<3x3x16xf32> to vector<1x1x16xf32>
    %81 = vector.shape_cast %80 : vector<1x1x16xf32> to vector<16xf32>
    %82 = vector.shape_cast %81 : vector<16xf32> to vector<1x16xf32>
    %83 = vector.broadcast %79 : vector<256x1xf32> to vector<256x16xf32>
    %84 = vector.broadcast %82 : vector<1x16xf32> to vector<256x16xf32>
    %85 = arith.mulf %83, %84 : vector<256x16xf32>
    %86 = arith.addf %77, %85 : vector<256x16xf32>
    %cst_6 = arith.constant dense<0.000000e+00> : vector<16xf32>
    %87 = vector.multi_reduction <add>, %86, %cst_6 [0] : vector<256x16xf32> to vector<16xf32>
    %88 = vector.shape_cast %87 : vector<16xf32> to vector<1x16xf32>
    %cst_7 = arith.constant 2.560000e+02 : f32
    %89 = vector.broadcast %cst_7 : f32 to vector<1x16xf32>
    %90 = arith.divf %88, %89 : vector<1x16xf32>
    %91 = vector.broadcast %90 : vector<1x16xf32> to vector<256x16xf32>
    %92 = arith.subf %86, %91 : vector<256x16xf32>
    %93 = arith.mulf %92, %92 : vector<256x16xf32>
    %cst_8 = arith.constant dense<0.000000e+00> : vector<16xf32>
    %94 = vector.multi_reduction <add>, %93, %cst_8 [0] : vector<256x16xf32> to vector<16xf32>
    %95 = vector.shape_cast %94 : vector<16xf32> to vector<1x16xf32>
    %cst_9 = arith.constant 2.560000e+02 : f32
    %96 = vector.broadcast %cst_9 : f32 to vector<1x16xf32>
    %97 = arith.divf %95, %96 : vector<1x16xf32>
    %98 = vector.broadcast %90 : vector<1x16xf32> to vector<256x16xf32>
    %99 = arith.subf %86, %98 : vector<256x16xf32>
    %cst_10 = arith.constant 9.99999974E-6 : f32
    %100 = vector.broadcast %cst_10 : f32 to vector<1x16xf32>
    %101 = arith.addf %97, %100 : vector<1x16xf32>
    %102 = math.rsqrt %101 : vector<1x16xf32>
    %103 = vector.broadcast %102 : vector<1x16xf32> to vector<256x16xf32>
    %104 = arith.mulf %99, %103 : vector<256x16xf32>
    %c0_11 = arith.constant 0 : index
    %c0_12 = arith.constant 0 : index
    %105 = vector.load %arg2[%c0_11, %c0_12] : memref<1x16xf32, #tpu.memory_space<vmem>>, vector<1x16xf32>
    %106 = vector.broadcast %105 : vector<1x16xf32> to vector<256x16xf32>
    %107 = arith.mulf %104, %106 : vector<256x16xf32>
    %c0_13 = arith.constant 0 : index
    %c0_14 = arith.constant 0 : index
    %108 = vector.load %arg3[%c0_13, %c0_14] : memref<1x16xf32, #tpu.memory_space<vmem>>, vector<1x16xf32>
    %109 = vector.broadcast %108 : vector<1x16xf32> to vector<256x16xf32>
    %110 = arith.addf %107, %109 : vector<256x16xf32>
    %cst_15 = arith.constant 0.000000e+00 : f32
    %111 = vector.broadcast %cst_15 : f32 to vector<256x16xf32>
    %112 = arith.maximumf %110, %111 : vector<256x16xf32>
    %113 = vector.shape_cast %112 : vector<256x16xf32> to vector<2x16x8x16xf32>
    %c0_16 = arith.constant 0 : index
    %c0_17 = arith.constant 0 : index
    %c0_18 = arith.constant 0 : index
    %c0_19 = arith.constant 0 : index
    %114 = vector.load %arg4[%c0_16, %c0_17, %c0_18, %c0_19] : memref<2x16x8x16xf32, #tpu.memory_space<vmem>>, vector<2x16x8x16xf32>
    tpu.vector_store %arg4[%c0_16, %c0_17, %c0_18, %c0_19], %113 {strides = array<i32>} : memref<2x16x8x16xf32, #tpu.memory_space<vmem>>, vector<2x16x8x16xf32>,
    return
  }
}

</mosaic_0001>

<llo_original>
// kernel: tpu_custom_call.1
$region0: #{tpu_custom_call.1}
  #allocation0 [shape = 'u32[]', space=smem, size = 0x4, offset = 0x4, fixed_abs, tag = 'smem constant byte address 0x4 - core index']
  #allocation1 [shape = 'u32[144,128]{1,0:T(1,128)}', space=vmem, size = 0x12000, scoped, tag = 'internal scratch']
  %s0 = inlined_call_operand.vmem [shape: f32[2,18,10,1], index: 0, kind: input, shape index: {}]
  %s1 = inlined_call_operand.vmem [shape: f32[3,3,16], index: 1, kind: input, shape index: {}]
  %s2 = inlined_call_operand.vmem [shape: f32[1,16], index: 2, kind: input, shape index: {}]
  %s3 = inlined_call_operand.vmem [shape: f32[1,16], index: 3, kind: input, shape index: {}]
  %s4 = inlined_call_operand.hbm [shape: f32[2,16,8,16], index: 4, kind: output, shape index: {}]
  %s5 = sld [smem:[#allocation0]]
  $region26: #{tpu_custom_call.1} parent=0
    _
  %s7 = ssub.s32 1, %s5
  %s8 = scalar_select 0, %s7, %s5
  $region1: #{tpu_custom_call.1} parent=0
    #allocation2 [shape = 'u8[131072]{0}', space=vmem, size = 0x20000, scoped, tag = 'output window, operand 0, single buffered']
    #allocation3 [shape = 's32[1]{0}', space=sflag, size = 0x4, scoped, tag = 'scoped memory for tpu_custom_call.1']
    %9 = vsyncpa [#allocation3], 0
    // Predicated region
    $region2: #{tpu_custom_call.1} parent=1 // pred_check
      _
    $region3: #{tpu_custom_call.1} parent=1 // pred_check_branch
      %11 = sbr.rel (0) target = $region5
    $region4: #{tpu_custom_call.1} parent=1 // pred_region
      _
    $region5: #{tpu_custom_call.1} parent=1 // pred_fallthru
      _
    // Predicated region
    $region6: #{tpu_custom_call.1} parent=1 // pred_check
      _
    $region7: #{tpu_custom_call.1} parent=1 // pred_check_branch
      %13 = sbr.rel (0) target = $region9
    $region8: #{tpu_custom_call.1} parent=1 // pred_region
      _
    $region9: #{tpu_custom_call.1} parent=1 // pred_fallthru
      _
    // Predicated region
    $region10: #{tpu_custom_call.1} parent=1 // pred_check
      _
    $region11: #{tpu_custom_call.1} parent=1 // pred_check_branch
      %15 = sbr.rel (0) target = $region13
    $region12: #{tpu_custom_call.1} parent=1 // pred_region
      _
    $region13: #{tpu_custom_call.1} parent=1 // pred_fallthru
      _
    // Predicated region
    $region14: #{tpu_custom_call.1} parent=1 // pred_check
      _
    $region15: #{tpu_custom_call.1} parent=1 // pred_check_branch
      %17 = sbr.rel (0) target = $region17
    $region16: #{tpu_custom_call.1} parent=1 // pred_region
      _
    $region17: #{tpu_custom_call.1} parent=1 // pred_fallthru
      _
    %v18 = vld [vmem:[%s0] sm:$0xff]
    %v19 = vld [vmem:[%s0 + $0x8] sm:$0x3]
    %v20 = vld [vmem:[%s0 + $0x10] sm:$0xff]
    %v21 = vld [vmem:[%s0 + $0x18] sm:$0x3]
    %v22 = vld [vmem:[%s0 + $0x20] sm:$0xff]
    %v23 = vld [vmem:[%s0 + $0x28] sm:$0x3]
    %v24 = vld [vmem:[%s0 + $0x30] sm:$0xff]
    %v25 = vld [vmem:[%s0 + $0x38] sm:$0x3]
    %v26 = vld [vmem:[%s0 + $0x40] sm:$0xff]
    %v27 = vld [vmem:[%s0 + $0x48] sm:$0x3]
    %v28 = vld [vmem:[%s0 + $0x50] sm:$0xff]
    %v29 = vld [vmem:[%s0 + $0x58] sm:$0x3]
    %v30 = vld [vmem:[%s0 + $0x60] sm:$0xff]
    %v31 = vld [vmem:[%s0 + $0x68] sm:$0x3]
    %v32 = vld [vmem:[%s0 + $0x70] sm:$0xff]
    %v33 = vld [vmem:[%s0 + $0x78] sm:$0x3]
    %v34 = vld [vmem:[%s0 + $0x80] sm:$0xff]
    %v35 = vld [vmem:[%s0 + $0x88] sm:$0x3]
    %v36 = vld [vmem:[%s0 + $0x90] sm:$0xff]
    %v37 = vld [vmem:[%s0 + $0x98] sm:$0x3]
    %v38 = vld [vmem:[%s0 + $0xa0] sm:$0xff]
    %v39 = vld [vmem:[%s0 + $0xa8] sm:$0x3]
    %v40 = vld [vmem:[%s0 + $0xb0] sm:$0xff]
    %v41 = vld [vmem:[%s0 + $0xb8] sm:$0x3]
    %v42 = vld [vmem:[%s0 + $0xc0] sm:$0xff]
    %v43 = vld [vmem:[%s0 + $0xc8] sm:$0x3]
    %v44 = vld [vmem:[%s0 + $0xd0] sm:$0xff]
    %v45 = vld [vmem:[%s0 + $0xd8] sm:$0x3]
    %v46 = vld [vmem:[%s0 + $0xe0] sm:$0xff]
    %v47 = vld [vmem:[%s0 + $0xe8] sm:$0x3]
    %v48 = vld [vmem:[%s0 + $0xf0] sm:$0xff]
    %v49 = vld [vmem:[%s0 + $0xf8] sm:$0x3]
    %v50 = vld [vmem:[%s0 + $0x100] sm:$0xff]
    %v51 = vld [vmem:[%s0 + $0x108] sm:$0x3]
    %v52 = vld [vmem:[%s0 + $0x110] sm:$0xff]
    %v53 = vld [vmem:[%s0 + $0x118] sm:$0x3]
    %v54 = vld [vmem:[%s0 + $0x120] sm:$0xff]
    %v55 = vld [vmem:[%s0 + $0x128] sm:$0x3]
    %v56 = vld [vmem:[%s0 + $0x130] sm:$0xff]
    %v57 = vld [vmem:[%s0 + $0x138] sm:$0x3]
    %v58 = vld [vmem:[%s0 + $0x140] sm:$0xff]
    %v59 = vld [vmem:[%s0 + $0x148] sm:$0x3]
    %v60 = vld [vmem:[%s0 + $0x150] sm:$0xff]
    %v61 = vld [vmem:[%s0 + $0x158] sm:$0x3]
    %v62 = vld [vmem:[%s0 + $0x160] sm:$0xff]
    %v63 = vld [vmem:[%s0 + $0x168] sm:$0x3]
    %v64 = vld [vmem:[%s0 + $0x170] sm:$0xff]
    %v65 = vld [vmem:[%s0 + $0x178] sm:$0x3]
    %v66 = vld [vmem:[%s0 + $0x180] sm:$0xff]
    %v67 = vld [vmem:[%s0 + $0x188] sm:$0x3]
    %v68 = vld [vmem:[%s0 + $0x190] sm:$0xff]
    %v69 = vld [vmem:[%s0 + $0x198] sm:$0x3]
    %v70 = vld [vmem:[%s0 + $0x1a0] sm:$0xff]
    %v71 = vld [vmem:[%s0 + $0x1a8] sm:$0x3]
    %v72 = vld [vmem:[%s0 + $0x1b0] sm:$0xff]
    %v73 = vld [vmem:[%s0 + $0x1b8] sm:$0x3]
    %v74 = vld [vmem:[%s0 + $0x1c0] sm:$0xff]
    %v75 = vld [vmem:[%s0 + $0x1c8] sm:$0x3]
    %v76 = vld [vmem:[%s0 + $0x1d0] sm:$0xff]
    %v77 = vld [vmem:[%s0 + $0x1d8] sm:$0x3]
    %v78 = vld [vmem:[%s0 + $0x1e0] sm:$0xff]
    %v79 = vld [vmem:[%s0 + $0x1e8] sm:$0x3]
    %v80 = vld [vmem:[%s0 + $0x1f0] sm:$0xff]
    %v81 = vld [vmem:[%s0 + $0x1f8] sm:$0x3]
    %v82 = vld [vmem:[%s0 + $0x200] sm:$0xff]
    %v83 = vld [vmem:[%s0 + $0x208] sm:$0x3]
    %v84 = vld [vmem:[%s0 + $0x210] sm:$0xff]
    %v85 = vld [vmem:[%s0 + $0x218] sm:$0x3]
    %v86 = vld [vmem:[%s0 + $0x220] sm:$0xff]
    %v87 = vld [vmem:[%s0 + $0x228] sm:$0x3]
    %v88 = vld [vmem:[%s0 + $0x230] sm:$0xff]
    %v89 = vld [vmem:[%s0 + $0x238] sm:$0x3]
    %v90 = vld [vmem:[%s1] sm:$0x7]
    %v91 = vld [vmem:[%s1 + $0x4] sm:$0x7]
    %v92 = vld [vmem:[%s1 + $0x8] sm:$0x7]
    %94 = vset.pattern.permute.xlu0 0
    %95 = vperm.xlu0 %94, %v18
    %v96 = vpop.permute.xlu0 %95
    %99 = vset.pattern.permute.xlu0 0
    %100 = vperm.xlu0 %99, %v20
    %v101 = vpop.permute.xlu0 %100
    %104 = vset.pattern.permute.xlu0 0
    %105 = vperm.xlu0 %104, %v22
    %v106 = vpop.permute.xlu0 %105
    %109 = vset.pattern.permute.xlu0 0
    %110 = vperm.xlu0 %109, %v24
    %v111 = vpop.permute.xlu0 %110
    %114 = vset.pattern.permute.xlu0 0
    %115 = vperm.xlu0 %114, %v26
    %v116 = vpop.permute.xlu0 %115
    %119 = vset.pattern.permute.xlu0 0
    %120 = vperm.xlu0 %119, %v28
    %v121 = vpop.permute.xlu0 %120
    %124 = vset.pattern.permute.xlu0 0
    %125 = vperm.xlu0 %124, %v30
    %v126 = vpop.permute.xlu0 %125
    %129 = vset.pattern.permute.xlu0 0
    %130 = vperm.xlu0 %129, %v32
    %v131 = vpop.permute.xlu0 %130
    %134 = vset.pattern.permute.xlu0 0
    %135 = vperm.xlu0 %134, %v34
    %v136 = vpop.permute.xlu0 %135
    %139 = vset.pattern.permute.xlu0 0
    %140 = vperm.xlu0 %139, %v36
    %v141 = vpop.permute.xlu0 %140
    %144 = vset.pattern.permute.xlu0 0
    %145 = vperm.xlu0 %144, %v38
    %v146 = vpop.permute.xlu0 %145
    %149 = vset.pattern.permute.xlu0 0
    %150 = vperm.xlu0 %149, %v40
    %v151 = vpop.permute.xlu0 %150
    %154 = vset.pattern.permute.xlu0 0
    %155 = vperm.xlu0 %154, %v42
    %v156 = vpop.permute.xlu0 %155
    %159 = vset.pattern.permute.xlu0 0
    %160 = vperm.xlu0 %159, %v44
    %v161 = vpop.permute.xlu0 %160
    %164 = vset.pattern.permute.xlu0 0
    %165 = vperm.xlu0 %164, %v46
    %v166 = vpop.permute.xlu0 %165
    %169 = vset.pattern.permute.xlu0 0
    %170 = vperm.xlu0 %169, %v48
    %v171 = vpop.permute.xlu0 %170
    %174 = vset.pattern.permute.xlu0 0
    %175 = vperm.xlu0 %174, %v54
    %v176 = vpop.permute.xlu0 %175
    %179 = vset.pattern.permute.xlu0 0
    %180 = vperm.xlu0 %179, %v56
    %v181 = vpop.permute.xlu0 %180
    %184 = vset.pattern.permute.xlu0 0
    %185 = vperm.xlu0 %184, %v58
    %v186 = vpop.permute.xlu0 %185
    %189 = vset.pattern.permute.xlu0 0
    %190 = vperm.xlu0 %189, %v60
    %v191 = vpop.permute.xlu0 %190
    %194 = vset.pattern.permute.xlu0 0
    %195 = vperm.xlu0 %194, %v62
    %v196 = vpop.permute.xlu0 %195
    %199 = vset.pattern.permute.xlu0 0
    %200 = vperm.xlu0 %199, %v64
    %v201 = vpop.permute.xlu0 %200
    %204 = vset.pattern.permute.xlu0 0
    %205 = vperm.xlu0 %204, %v66
    %v206 = vpop.permute.xlu0 %205
    %209 = vset.pattern.permute.xlu0 0
    %210 = vperm.xlu0 %209, %v68
    %v211 = vpop.permute.xlu0 %210
    %214 = vset.pattern.permute.xlu0 0
    %215 = vperm.xlu0 %214, %v70
    %v216 = vpop.permute.xlu0 %215
    %219 = vset.pattern.permute.xlu0 0
    %220 = vperm.xlu0 %219, %v72
    %v221 = vpop.permute.xlu0 %220
    %224 = vset.pattern.permute.xlu0 0
    %225 = vperm.xlu0 %224, %v74
    %v226 = vpop.permute.xlu0 %225
    %229 = vset.pattern.permute.xlu0 0
    %230 = vperm.xlu0 %229, %v76
    %v231 = vpop.permute.xlu0 %230
    %234 = vset.pattern.permute.xlu0 0
    %235 = vperm.xlu0 %234, %v78
    %v236 = vpop.permute.xlu0 %235
    %239 = vset.pattern.permute.xlu0 0
    %240 = vperm.xlu0 %239, %v80
    %v241 = vpop.permute.xlu0 %240
    %244 = vset.pattern.permute.xlu0 0
    %245 = vperm.xlu0 %244, %v82
    %v246 = vpop.permute.xlu0 %245
    %249 = vset.pattern.permute.xlu0 0
    %250 = vperm.xlu0 %249, %v84
    %v251 = vpop.permute.xlu0 %250
    %v253 = vlaneseq
    %v254 = vshrl.u32 %v253, 7
    %v255 = vsub.s32 0, %v254
    %v256 = vrot.slane %v90, %v255
    %v257 = vmul.f32 %v96, %v256
    %v258 = vmul.f32 %v101, %v256
    %v259 = vmul.f32 %v106, %v256
    %v260 = vmul.f32 %v111, %v256
    %v261 = vmul.f32 %v116, %v256
    %v262 = vmul.f32 %v121, %v256
    %v263 = vmul.f32 %v126, %v256
    %v264 = vmul.f32 %v131, %v256
    %v265 = vmul.f32 %v136, %v256
    %v266 = vmul.f32 %v141, %v256
    %v267 = vmul.f32 %v146, %v256
    %v268 = vmul.f32 %v151, %v256
    %v269 = vmul.f32 %v156, %v256
    %v270 = vmul.f32 %v161, %v256
    %v271 = vmul.f32 %v166, %v256
    %v272 = vmul.f32 %v171, %v256
    %v273 = vmul.f32 %v176, %v256
    %v274 = vmul.f32 %v181, %v256
    %v275 = vmul.f32 %v186, %v256
    %v276 = vmul.f32 %v191, %v256
    %v277 = vmul.f32 %v196, %v256
    %v278 = vmul.f32 %v201, %v256
    %v279 = vmul.f32 %v206, %v256
    %v280 = vmul.f32 %v211, %v256
    %v281 = vmul.f32 %v216, %v256
    %v282 = vmul.f32 %v221, %v256
    %v283 = vmul.f32 %v226, %v256
    %v284 = vmul.f32 %v231, %v256
    %v285 = vmul.f32 %v236, %v256
    %v286 = vmul.f32 %v241, %v256
    %v287 = vmul.f32 %v246, %v256
    %v288 = vmul.f32 %v251, %v256
    %v289 = vadd.f32 %v257, 0.0
    %v290 = vadd.f32 %v258, 0.0
    %v291 = vadd.f32 %v259, 0.0
    %v292 = vadd.f32 %v260, 0.0
    %v293 = vadd.f32 %v261, 0.0
    %v294 = vadd.f32 %v262, 0.0
    %v295 = vadd.f32 %v263, 0.0
    %v296 = vadd.f32 %v264, 0.0
    %v297 = vadd.f32 %v265, 0.0
    %v298 = vadd.f32 %v266, 0.0
    %v299 = vadd.f32 %v267, 0.0
    %v300 = vadd.f32 %v268, 0.0
    %v301 = vadd.f32 %v269, 0.0
    %v302 = vadd.f32 %v270, 0.0
    %v303 = vadd.f32 %v271, 0.0
    %v304 = vadd.f32 %v272, 0.0
    %v305 = vadd.f32 %v273, 0.0
    %v306 = vadd.f32 %v274, 0.0
    %v307 = vadd.f32 %v275, 0.0
    %v308 = vadd.f32 %v276, 0.0
    %v309 = vadd.f32 %v277, 0.0
    %v310 = vadd.f32 %v278, 0.0
    %v311 = vadd.f32 %v279, 0.0
    %v312 = vadd.f32 %v280, 0.0
    %v313 = vadd.f32 %v281, 0.0
    %v314 = vadd.f32 %v282, 0.0
    %v315 = vadd.f32 %v283, 0.0
    %v316 = vadd.f32 %v284, 0.0
    %v317 = vadd.f32 %v285, 0.0
    %v318 = vadd.f32 %v286, 0.0
    %v319 = vadd.f32 %v287, 0.0
    %v320 = vadd.f32 %v288, 0.0
    %vm353 = vcmask 1046528
    %v354 = vrot.slane %v18, 1
    %v355 = vrot.slane %v19, 1
    %v356 = vsel %vm353, %v354, %v355
    %v357 = vrot.slane %v20, 1
    %v358 = vrot.slane %v21, 1
    %v359 = vsel %vm353, %v357, %v358
    %v360 = vrot.slane %v22, 1
    %v361 = vrot.slane %v23, 1
    %v362 = vsel %vm353, %v360, %v361
    %v363 = vrot.slane %v24, 1
    %v364 = vrot.slane %v25, 1
    %v365 = vsel %vm353, %v363, %v364
    %v366 = vrot.slane %v26, 1
    %v367 = vrot.slane %v27, 1
    %v368 = vsel %vm353, %v366, %v367
    %v369 = vrot.slane %v28, 1
    %v370 = vrot.slane %v29, 1
    %v371 = vsel %vm353, %v369, %v370
    %v372 = vrot.slane %v30, 1
    %v373 = vrot.slane %v31, 1
    %v374 = vsel %vm353, %v372, %v373
    %v375 = vrot.slane %v32, 1
    %v376 = vrot.slane %v33, 1
    %v377 = vsel %vm353, %v375, %v376
    %v378 = vrot.slane %v34, 1
    %v379 = vrot.slane %v35, 1
    %v380 = vsel %vm353, %v378, %v379
    %v381 = vrot.slane %v36, 1
    %v382 = vrot.slane %v37, 1
    %v383 = vsel %vm353, %v381, %v382
    %v384 = vrot.slane %v38, 1
    %v385 = vrot.slane %v39, 1
    %v386 = vsel %vm353, %v384, %v385
    %v387 = vrot.slane %v40, 1
    %v388 = vrot.slane %v41, 1
    %v389 = vsel %vm353, %v387, %v388
    %v390 = vrot.slane %v42, 1
    %v391 = vrot.slane %v43, 1
    %v392 = vsel %vm353, %v390, %v391
    %v393 = vrot.slane %v44, 1
    %v394 = vrot.slane %v45, 1
    %v395 = vsel %vm353, %v393, %v394
    %v396 = vrot.slane %v46, 1
    %v397 = vrot.slane %v47, 1
    %v398 = vsel %vm353, %v396, %v397
    %v399 = vrot.slane %v48, 1
    %v400 = vrot.slane %v49, 1
    %v401 = vsel %vm353, %v399, %v400
    %v402 = vrot.slane %v54, 1
    %v403 = vrot.slane %v55, 1
    %v404 = vsel %vm353, %v402, %v403
    %v405 = vrot.slane %v56, 1
    %v406 = vrot.slane %v57, 1
    %v407 = vsel %vm353, %v405, %v406
    %v408 = vrot.slane %v58, 1
    %v409 = vrot.slane %v59, 1
    %v410 = vsel %vm353, %v408, %v409
    %v411 = vrot.slane %v60, 1
    %v412 = vrot.slane %v61, 1
    %v413 = vsel %vm353, %v411, %v412
    %v414 = vrot.slane %v62, 1
    %v415 = vrot.slane %v63, 1
    %v416 = vsel %vm353, %v414, %v415
    %v417 = vrot.slane %v64, 1
    %v418 = vrot.slane %v65, 1
    %v419 = vsel %vm353, %v417, %v418
    %v420 = vrot.slane %v66, 1
    %v421 = vrot.slane %v67, 1
    %v422 = vsel %vm353, %v420, %v421
    %v423 = vrot.slane %v68, 1
    %v424 = vrot.slane %v69, 1
    %v425 = vsel %vm353, %v423, %v424
    %v426 = vrot.slane %v70, 1
    %v427 = vrot.slane %v71, 1
    %v428 = vsel %vm353, %v426, %v427
    %v429 = vrot.slane %v72, 1
    %v430 = vrot.slane %v73, 1
    %v431 = vsel %vm353, %v429, %v430
    %v432 = vrot.slane %v74, 1
    %v433 = vrot.slane %v75, 1
    %v434 = vsel %vm353, %v432, %v433
    %v435 = vrot.slane %v76, 1
    %v436 = vrot.slane %v77, 1
    %v437 = vsel %vm353, %v435, %v436
    %v438 = vrot.slane %v78, 1
    %v439 = vrot.slane %v79, 1
    %v440 = vsel %vm353, %v438, %v439
    %v441 = vrot.slane %v80, 1
    %v442 = vrot.slane %v81, 1
    %v443 = vsel %vm353, %v441, %v442
    %v444 = vrot.slane %v82, 1
    %v445 = vrot.slane %v83, 1
    %v446 = vsel %vm353, %v444, %v445
    %v447 = vrot.slane %v84, 1
    %v448 = vrot.slane %v85, 1
    %v449 = vsel %vm353, %v447, %v448
    %450 = vset.pattern.permute.xlu0 0
    %451 = vperm.xlu0 %450, %v356
    %v452 = vpop.permute.xlu0 %451
    %454 = vset.pattern.permute.xlu0 0
    %455 = vperm.xlu0 %454, %v359
    %v456 = vpop.permute.xlu0 %455
    %458 = vset.pattern.permute.xlu0 0
    %459 = vperm.xlu0 %458, %v362
    %v460 = vpop.permute.xlu0 %459
    %462 = vset.pattern.permute.xlu0 0
    %463 = vperm.xlu0 %462, %v365
    %v464 = vpop.permute.xlu0 %463
    %466 = vset.pattern.permute.xlu0 0
    %467 = vperm.xlu0 %466, %v368
    %v468 = vpop.permute.xlu0 %467
    %470 = vset.pattern.permute.xlu0 0
    %471 = vperm.xlu0 %470, %v371
    %v472 = vpop.permute.xlu0 %471
    %474 = vset.pattern.permute.xlu0 0
    %475 = vperm.xlu0 %474, %v374
    %v476 = vpop.permute.xlu0 %475
    %478 = vset.pattern.permute.xlu0 0
    %479 = vperm.xlu0 %478, %v377
    %v480 = vpop.permute.xlu0 %479
    %482 = vset.pattern.permute.xlu0 0
    %483 = vperm.xlu0 %482, %v380
    %v484 = vpop.permute.xlu0 %483
    %486 = vset.pattern.permute.xlu0 0
    %487 = vperm.xlu0 %486, %v383
    %v488 = vpop.permute.xlu0 %487
    %490 = vset.pattern.permute.xlu0 0
    %491 = vperm.xlu0 %490, %v386
    %v492 = vpop.permute.xlu0 %491
    %494 = vset.pattern.permute.xlu0 0
    %495 = vperm.xlu0 %494, %v389
    %v496 = vpop.permute.xlu0 %495
    %498 = vset.pattern.permute.xlu0 0
    %499 = vperm.xlu0 %498, %v392
    %v500 = vpop.permute.xlu0 %499
    %502 = vset.pattern.permute.xlu0 0
    %503 = vperm.xlu0 %502, %v395
    %v504 = vpop.permute.xlu0 %503
    %506 = vset.pattern.permute.xlu0 0
    %507 = vperm.xlu0 %506, %v398
    %v508 = vpop.permute.xlu0 %507
    %510 = vset.pattern.permute.xlu0 0
    %511 = vperm.xlu0 %510, %v401
    %v512 = vpop.permute.xlu0 %511
    %514 = vset.pattern.permute.xlu0 0
    %515 = vperm.xlu0 %514, %v404
    %v516 = vpop.permute.xlu0 %515
    %518 = vset.pattern.permute.xlu0 0
    %519 = vperm.xlu0 %518, %v407
    %v520 = vpop.permute.xlu0 %519
    %522 = vset.pattern.permute.xlu0 0
    %523 = vperm.xlu0 %522, %v410
    %v524 = vpop.permute.xlu0 %523
    %526 = vset.pattern.permute.xlu0 0
    %527 = vperm.xlu0 %526, %v413
    %v528 = vpop.permute.xlu0 %527
    %530 = vset.pattern.permute.xlu0 0
    %531 = vperm.xlu0 %530, %v416
    %v532 = vpop.permute.xlu0 %531
    %534 = vset.pattern.permute.xlu0 0
    %535 = vperm.xlu0 %534, %v419
    %v536 = vpop.permute.xlu0 %535
    %538 = vset.pattern.permute.xlu0 0
    %539 = vperm.xlu0 %538, %v422
    %v540 = vpop.permute.xlu0 %539
    %542 = vset.pattern.permute.xlu0 0
    %543 = vperm.xlu0 %542, %v425
    %v544 = vpop.permute.xlu0 %543
    %546 = vset.pattern.permute.xlu0 0
    %547 = vperm.xlu0 %546, %v428
    %v548 = vpop.permute.xlu0 %547
    %550 = vset.pattern.permute.xlu0 0
    %551 = vperm.xlu0 %550, %v431
    %v552 = vpop.permute.xlu0 %551
    %554 = vset.pattern.permute.xlu0 0
    %555 = vperm.xlu0 %554, %v434
    %v556 = vpop.permute.xlu0 %555
    %558 = vset.pattern.permute.xlu0 0
    %559 = vperm.xlu0 %558, %v437
    %v560 = vpop.permute.xlu0 %559
    %562 = vset.pattern.permute.xlu0 0
    %563 = vperm.xlu0 %562, %v440
    %v564 = vpop.permute.xlu0 %563
    %566 = vset.pattern.permute.xlu0 0
    %567 = vperm.xlu0 %566, %v443
    %v568 = vpop.permute.xlu0 %567
    %570 = vset.pattern.permute.xlu0 0
    %571 = vperm.xlu0 %570, %v446
    %v572 = vpop.permute.xlu0 %571
    %574 = vset.pattern.permute.xlu0 0
    %575 = vperm.xlu0 %574, %v449
    %v576 = vpop.permute.xlu0 %575
    %v578 = vlaneseq
    %v579 = vshrl.u32 %v578, 7
    %v580 = vsub.s32 1, %v579
    %v581 = vrot.slane %v90, %v580
    %v582 = vmul.f32 %v452, %v581
    %v583 = vmul.f32 %v456, %v581
    %v584 = vmul.f32 %v460, %v581
    %v585 = vmul.f32 %v464, %v581
    %v586 = vmul.f32 %v468, %v581
    %v587 = vmul.f32 %v472, %v581
    %v588 = vmul.f32 %v476, %v581
    %v589 = vmul.f32 %v480, %v581
    %v590 = vmul.f32 %v484, %v581
    %v591 = vmul.f32 %v488, %v581
    %v592 = vmul.f32 %v492, %v581
    %v593 = vmul.f32 %v496, %v581
    %v594 = vmul.f32 %v500, %v581
    %v595 = vmul.f32 %v504, %v581
    %v596 = vmul.f32 %v508, %v581
    %v597 = vmul.f32 %v512, %v581
    %v598 = vmul.f32 %v516, %v581
    %v599 = vmul.f32 %v520, %v581
    %v600 = vmul.f32 %v524, %v581
    %v601 = vmul.f32 %v528, %v581
    %v602 = vmul.f32 %v532, %v581
    %v603 = vmul.f32 %v536, %v581
    %v604 = vmul.f32 %v540, %v581
    %v605 = vmul.f32 %v544, %v581
    %v606 = vmul.f32 %v548, %v581
    %v607 = vmul.f32 %v552, %v581
    %v608 = vmul.f32 %v556, %v581
    %v609 = vmul.f32 %v560, %v581
    %v610 = vmul.f32 %v564, %v581
    %v611 = vmul.f32 %v568, %v581
    %v612 = vmul.f32 %v572, %v581
    %v613 = vmul.f32 %v576, %v581
    %v614 = vadd.f32 %v289, %v582
    %v615 = vadd.f32 %v290, %v583
    %v616 = vadd.f32 %v291, %v584
    %v617 = vadd.f32 %v292, %v585
    %v618 = vadd.f32 %v293, %v586
    %v619 = vadd.f32 %v294, %v587
    %v620 = vadd.f32 %v295, %v588
    %v621 = vadd.f32 %v296, %v589
    %v622 = vadd.f32 %v297, %v590
    %v623 = vadd.f32 %v298, %v591
    %v624 = vadd.f32 %v299, %v592
    %v625 = vadd.f32 %v300, %v593
    %v626 = vadd.f32 %v301, %v594
    %v627 = vadd.f32 %v302, %v595
    %v628 = vadd.f32 %v303, %v596
    %v629 = vadd.f32 %v304, %v597
    %v630 = vadd.f32 %v305, %v598
    %v631 = vadd.f32 %v306, %v599
    %v632 = vadd.f32 %v307, %v600
    %v633 = vadd.f32 %v308, %v601
    %v634 = vadd.f32 %v309, %v602
    %v635 = vadd.f32 %v310, %v603
    %v636 = vadd.f32 %v311, %v604
    %v637 = vadd.f32 %v312, %v605
    %v638 = vadd.f32 %v313, %v606
    %v639 = vadd.f32 %v314, %v607
    %v640 = vadd.f32 %v315, %v608
    %v641 = vadd.f32 %v316, %v609
    %v642 = vadd.f32 %v317, %v610
    %v643 = vadd.f32 %v318, %v611
    %v644 = vadd.f32 %v319, %v612
    %v645 = vadd.f32 %v320, %v613
    %vm646 = vcmask 1045504
    %v647 = vrot.slane %v18, 2
    %v648 = vrot.slane %v19, 2
    %v649 = vsel %vm646, %v647, %v648
    %v650 = vrot.slane %v20, 2
    %v651 = vrot.slane %v21, 2
    %v652 = vsel %vm646, %v650, %v651
    %v653 = vrot.slane %v22, 2
    %v654 = vrot.slane %v23, 2
    %v655 = vsel %vm646, %v653, %v654
    %v656 = vrot.slane %v24, 2
    %v657 = vrot.slane %v25, 2
    %v658 = vsel %vm646, %v656, %v657
    %v659 = vrot.slane %v26, 2
    %v660 = vrot.slane %v27, 2
    %v661 = vsel %vm646, %v659, %v660
    %v662 = vrot.slane %v28, 2
    %v663 = vrot.slane %v29, 2
    %v664 = vsel %vm646, %v662, %v663
    %v665 = vrot.slane %v30, 2
    %v666 = vrot.slane %v31, 2
    %v667 = vsel %vm646, %v665, %v666
    %v668 = vrot.slane %v32, 2
    %v669 = vrot.slane %v33, 2
    %v670 = vsel %vm646, %v668, %v669
    %v671 = vrot.slane %v34, 2
    %v672 = vrot.slane %v35, 2
    %v673 = vsel %vm646, %v671, %v672
    %v674 = vrot.slane %v36, 2
    %v675 = vrot.slane %v37, 2
    %v676 = vsel %vm646, %v674, %v675
    %v677 = vrot.slane %v38, 2
    %v678 = vrot.slane %v39, 2
    %v679 = vsel %vm646, %v677, %v678
    %v680 = vrot.slane %v40, 2
    %v681 = vrot.slane %v41, 2
    %v682 = vsel %vm646, %v680, %v681
    %v683 = vrot.slane %v42, 2
    %v684 = vrot.slane %v43, 2
    %v685 = vsel %vm646, %v683, %v684
    %v686 = vrot.slane %v44, 2
    %v687 = vrot.slane %v45, 2
    %v688 = vsel %vm646, %v686, %v687
    %v689 = vrot.slane %v46, 2
    %v690 = vrot.slane %v47, 2
    %v691 = vsel %vm646, %v689, %v690
    %v692 = vrot.slane %v48, 2
    %v693 = vrot.slane %v49, 2
    %v694 = vsel %vm646, %v692, %v693
    %v695 = vrot.slane %v54, 2
    %v696 = vrot.slane %v55, 2
    %v697 = vsel %vm646, %v695, %v696
    %v698 = vrot.slane %v56, 2
    %v699 = vrot.slane %v57, 2
    %v700 = vsel %vm646, %v698, %v699
    %v701 = vrot.slane %v58, 2
    %v702 = vrot.slane %v59, 2
    %v703 = vsel %vm646, %v701, %v702
    %v704 = vrot.slane %v60, 2
    %v705 = vrot.slane %v61, 2
    %v706 = vsel %vm646, %v704, %v705
    %v707 = vrot.slane %v62, 2
    %v708 = vrot.slane %v63, 2
    %v709 = vsel %vm646, %v707, %v708
    %v710 = vrot.slane %v64, 2
    %v711 = vrot.slane %v65, 2
    %v712 = vsel %vm646, %v710, %v711
    %v713 = vrot.slane %v66, 2
    %v714 = vrot.slane %v67, 2
    %v715 = vsel %vm646, %v713, %v714
    %v716 = vrot.slane %v68, 2
    %v717 = vrot.slane %v69, 2
    %v718 = vsel %vm646, %v716, %v717
    %v719 = vrot.slane %v70, 2
    %v720 = vrot.slane %v71, 2
    %v721 = vsel %vm646, %v719, %v720
    %v722 = vrot.slane %v72, 2
    %v723 = vrot.slane %v73, 2
    %v724 = vsel %vm646, %v722, %v723
    %v725 = vrot.slane %v74, 2
    %v726 = vrot.slane %v75, 2
    %v727 = vsel %vm646, %v725, %v726
    %v728 = vrot.slane %v76, 2
    %v729 = vrot.slane %v77, 2
    %v730 = vsel %vm646, %v728, %v729
    %v731 = vrot.slane %v78, 2
    %v732 = vrot.slane %v79, 2
    %v733 = vsel %vm646, %v731, %v732
    %v734 = vrot.slane %v80, 2
    %v735 = vrot.slane %v81, 2
    %v736 = vsel %vm646, %v734, %v735
    %v737 = vrot.slane %v82, 2
    %v738 = vrot.slane %v83, 2
    %v739 = vsel %vm646, %v737, %v738
    %v740 = vrot.slane %v84, 2
    %v741 = vrot.slane %v85, 2
    %v742 = vsel %vm646, %v740, %v741
    %743 = vset.pattern.permute.xlu0 0
    %744 = vperm.xlu0 %743, %v649
    %v745 = vpop.permute.xlu0 %744
    %747 = vset.pattern.permute.xlu0 0
    %748 = vperm.xlu0 %747, %v652
    %v749 = vpop.permute.xlu0 %748
    %751 = vset.pattern.permute.xlu0 0
    %752 = vperm.xlu0 %751, %v655
    %v753 = vpop.permute.xlu0 %752
    %755 = vset.pattern.permute.xlu0 0
    %756 = vperm.xlu0 %755, %v658
    %v757 = vpop.permute.xlu0 %756
    %759 = vset.pattern.permute.xlu0 0
    %760 = vperm.xlu0 %759, %v661
    %v761 = vpop.permute.xlu0 %760
    %763 = vset.pattern.permute.xlu0 0
    %764 = vperm.xlu0 %763, %v664
    %v765 = vpop.permute.xlu0 %764
    %767 = vset.pattern.permute.xlu0 0
    %768 = vperm.xlu0 %767, %v667
    %v769 = vpop.permute.xlu0 %768
    %771 = vset.pattern.permute.xlu0 0
    %772 = vperm.xlu0 %771, %v670
    %v773 = vpop.permute.xlu0 %772
    %775 = vset.pattern.permute.xlu0 0
    %776 = vperm.xlu0 %775, %v673
    %v777 = vpop.permute.xlu0 %776
    %779 = vset.pattern.permute.xlu0 0
    %780 = vperm.xlu0 %779, %v676
    %v781 = vpop.permute.xlu0 %780
    %783 = vset.pattern.permute.xlu0 0
    %784 = vperm.xlu0 %783, %v679
    %v785 = vpop.permute.xlu0 %784
    %787 = vset.pattern.permute.xlu0 0
    %788 = vperm.xlu0 %787, %v682
    %v789 = vpop.permute.xlu0 %788
    %791 = vset.pattern.permute.xlu0 0
    %792 = vperm.xlu0 %791, %v685
    %v793 = vpop.permute.xlu0 %792
    %795 = vset.pattern.permute.xlu0 0
    %796 = vperm.xlu0 %795, %v688
    %v797 = vpop.permute.xlu0 %796
    %799 = vset.pattern.permute.xlu0 0
    %800 = vperm.xlu0 %799, %v691
    %v801 = vpop.permute.xlu0 %800
    %803 = vset.pattern.permute.xlu0 0
    %804 = vperm.xlu0 %803, %v694
    %v805 = vpop.permute.xlu0 %804
    %807 = vset.pattern.permute.xlu0 0
    %808 = vperm.xlu0 %807, %v697
    %v809 = vpop.permute.xlu0 %808
    %811 = vset.pattern.permute.xlu0 0
    %812 = vperm.xlu0 %811, %v700
    %v813 = vpop.permute.xlu0 %812
    %815 = vset.pattern.permute.xlu0 0
    %816 = vperm.xlu0 %815, %v703
    %v817 = vpop.permute.xlu0 %816
    %819 = vset.pattern.permute.xlu0 0
    %820 = vperm.xlu0 %819, %v706
    %v821 = vpop.permute.xlu0 %820
    %823 = vset.pattern.permute.xlu0 0
    %824 = vperm.xlu0 %823, %v709
    %v825 = vpop.permute.xlu0 %824
    %827 = vset.pattern.permute.xlu0 0
    %828 = vperm.xlu0 %827, %v712
    %v829 = vpop.permute.xlu0 %828
    %831 = vset.pattern.permute.xlu0 0
    %832 = vperm.xlu0 %831, %v715
    %v833 = vpop.permute.xlu0 %832
    %835 = vset.pattern.permute.xlu0 0
    %836 = vperm.xlu0 %835, %v718
    %v837 = vpop.permute.xlu0 %836
    %839 = vset.pattern.permute.xlu0 0
    %840 = vperm.xlu0 %839, %v721
    %v841 = vpop.permute.xlu0 %840
    %843 = vset.pattern.permute.xlu0 0
    %844 = vperm.xlu0 %843, %v724
    %v845 = vpop.permute.xlu0 %844
    %847 = vset.pattern.permute.xlu0 0
    %848 = vperm.xlu0 %847, %v727
    %v849 = vpop.permute.xlu0 %848
    %851 = vset.pattern.permute.xlu0 0
    %852 = vperm.xlu0 %851, %v730
    %v853 = vpop.permute.xlu0 %852
    %855 = vset.pattern.permute.xlu0 0
    %856 = vperm.xlu0 %855, %v733
    %v857 = vpop.permute.xlu0 %856
    %859 = vset.pattern.permute.xlu0 0
    %860 = vperm.xlu0 %859, %v736
    %v861 = vpop.permute.xlu0 %860
    %863 = vset.pattern.permute.xlu0 0
    %864 = vperm.xlu0 %863, %v739
    %v865 = vpop.permute.xlu0 %864
    %867 = vset.pattern.permute.xlu0 0
    %868 = vperm.xlu0 %867, %v742
    %v869 = vpop.permute.xlu0 %868
    %v871 = vlaneseq
    %v872 = vshrl.u32 %v871, 7
    %v873 = vsub.s32 2, %v872
    %v874 = vrot.slane %v90, %v873
    %v875 = vmul.f32 %v745, %v874
    %v876 = vmul.f32 %v749, %v874
    %v877 = vmul.f32 %v753, %v874
    %v878 = vmul.f32 %v757, %v874
    %v879 = vmul.f32 %v761, %v874
    %v880 = vmul.f32 %v765, %v874
    %v881 = vmul.f32 %v769, %v874
    %v882 = vmul.f32 %v773, %v874
    %v883 = vmul.f32 %v777, %v874
    %v884 = vmul.f32 %v781, %v874
    %v885 = vmul.f32 %v785, %v874
    %v886 = vmul.f32 %v789, %v874
    %v887 = vmul.f32 %v793, %v874
    %v888 = vmul.f32 %v797, %v874
    %v889 = vmul.f32 %v801, %v874
    %v890 = vmul.f32 %v805, %v874
    %v891 = vmul.f32 %v809, %v874
    %v892 = vmul.f32 %v813, %v874
    %v893 = vmul.f32 %v817, %v874
    %v894 = vmul.f32 %v821, %v874
    %v895 = vmul.f32 %v825, %v874
    %v896 = vmul.f32 %v829, %v874
    %v897 = vmul.f32 %v833, %v874
    %v898 = vmul.f32 %v837, %v874
    %v899 = vmul.f32 %v841, %v874
    %v900 = vmul.f32 %v845, %v874
    %v901 = vmul.f32 %v849, %v874
    %v902 = vmul.f32 %v853, %v874
    %v903 = vmul.f32 %v857, %v874
    %v904 = vmul.f32 %v861, %v874
    %v905 = vmul.f32 %v865, %v874
    %v906 = vmul.f32 %v869, %v874
    %v907 = vadd.f32 %v614, %v875
    %v908 = vadd.f32 %v615, %v876
    %v909 = vadd.f32 %v616, %v877
    %v910 = vadd.f32 %v617, %v878
    %v911 = vadd.f32 %v618, %v879
    %v912 = vadd.f32 %v619, %v880
    %v913 = vadd.f32 %v620, %v881
    %v914 = vadd.f32 %v621, %v882
    %v915 = vadd.f32 %v622, %v883
    %v916 = vadd.f32 %v623, %v884
    %v917 = vadd.f32 %v624, %v885
    %v918 = vadd.f32 %v625, %v886
    %v919 = vadd.f32 %v626, %v887
    %v920 = vadd.f32 %v627, %v888
    %v921 = vadd.f32 %v628, %v889
    %v922 = vadd.f32 %v629, %v890
    %v923 = vadd.f32 %v630, %v891
    %v924 = vadd.f32 %v631, %v892
    %v925 = vadd.f32 %v632, %v893
    %v926 = vadd.f32 %v633, %v894
    %v927 = vadd.f32 %v634, %v895
    %v928 = vadd.f32 %v635, %v896
    %v929 = vadd.f32 %v636, %v897
    %v930 = vadd.f32 %v637, %v898
    %v931 = vadd.f32 %v638, %v899
    %v932 = vadd.f32 %v639, %v900
    %v933 = vadd.f32 %v640, %v901
    %v934 = vadd.f32 %v641, %v902
    %v935 = vadd.f32 %v642, %v903
    %v936 = vadd.f32 %v643, %v904
    %v937 = vadd.f32 %v644, %v905
    %v938 = vadd.f32 %v645, %v906
    %940 = vset.pattern.permute.xlu0 0
    %941 = vperm.xlu0 %940, %v50
    %v942 = vpop.permute.xlu0 %941
    %945 = vset.pattern.permute.xlu0 0
    %946 = vperm.xlu0 %945, %v86
    %v947 = vpop.permute.xlu0 %946
    %v949 = vlaneseq
    %v950 = vshrl.u32 %v949, 7
    %v951 = vsub.s32 0, %v950
    %v952 = vrot.slane %v91, %v951
    %v953 = vmul.f32 %v101, %v952
    %v954 = vmul.f32 %v106, %v952
    %v955 = vmul.f32 %v111, %v952
    %v956 = vmul.f32 %v116, %v952
    %v957 = vmul.f32 %v121, %v952
    %v958 = vmul.f32 %v126, %v952
    %v959 = vmul.f32 %v131, %v952
    %v960 = vmul.f32 %v136, %v952
    %v961 = vmul.f32 %v141, %v952
    %v962 = vmul.f32 %v146, %v952
    %v963 = vmul.f32 %v151, %v952
    %v964 = vmul.f32 %v156, %v952
    %v965 = vmul.f32 %v161, %v952
    %v966 = vmul.f32 %v166, %v952
    %v967 = vmul.f32 %v171, %v952
    %v968 = vmul.f32 %v942, %v952
    %v969 = vmul.f32 %v181, %v952
    %v970 = vmul.f32 %v186, %v952
    %v971 = vmul.f32 %v191, %v952
    %v972 = vmul.f32 %v196, %v952
    %v973 = vmul.f32 %v201, %v952
    %v974 = vmul.f32 %v206, %v952
    %v975 = vmul.f32 %v211, %v952
    %v976 = vmul.f32 %v216, %v952
    %v977 = vmul.f32 %v221, %v952
    %v978 = vmul.f32 %v226, %v952
    %v979 = vmul.f32 %v231, %v952
    %v980 = vmul.f32 %v236, %v952
    %v981 = vmul.f32 %v241, %v952
    %v982 = vmul.f32 %v246, %v952
    %v983 = vmul.f32 %v251, %v952
    %v984 = vmul.f32 %v947, %v952
    %v985 = vadd.f32 %v907, %v953
    %v986 = vadd.f32 %v908, %v954
    %v987 = vadd.f32 %v909, %v955
    %v988 = vadd.f32 %v910, %v956
    %v989 = vadd.f32 %v911, %v957
    %v990 = vadd.f32 %v912, %v958
    %v991 = vadd.f32 %v913, %v959
    %v992 = vadd.f32 %v914, %v960
    %v993 = vadd.f32 %v915, %v961
    %v994 = vadd.f32 %v916, %v962
    %v995 = vadd.f32 %v917, %v963
    %v996 = vadd.f32 %v918, %v964
    %v997 = vadd.f32 %v919, %v965
    %v998 = vadd.f32 %v920, %v966
    %v999 = vadd.f32 %v921, %v967
    %v1000 = vadd.f32 %v922, %v968
    %v1001 = vadd.f32 %v923, %v969
    %v1002 = vadd.f32 %v924, %v970
    %v1003 = vadd.f32 %v925, %v971
    %v1004 = vadd.f32 %v926, %v972
    %v1005 = vadd.f32 %v927, %v973
    %v1006 = vadd.f32 %v928, %v974
    %v1007 = vadd.f32 %v929, %v975
    %v1008 = vadd.f32 %v930, %v976
    %v1009 = vadd.f32 %v931, %v977
    %v1010 = vadd.f32 %v932, %v978
    %v1011 = vadd.f32 %v933, %v979
    %v1012 = vadd.f32 %v934, %v980
    %v1013 = vadd.f32 %v935, %v981
    %v1014 = vadd.f32 %v936, %v982
    %v1015 = vadd.f32 %v937, %v983
    %v1016 = vadd.f32 %v938, %v984
    %v1019 = vrot.slane %v50, 1
    %v1020 = vrot.slane %v51, 1
    %v1021 = vsel %vm353, %v1019, %v1020
    %v1022 = vrot.slane %v86, 1
    %v1023 = vrot.slane %v87, 1
    %v1024 = vsel %vm353, %v1022, %v1023
    %1025 = vset.pattern.permute.xlu0 0
    %1026 = vperm.xlu0 %1025, %v1021
    %v1027 = vpop.permute.xlu0 %1026
    %1029 = vset.pattern.permute.xlu0 0
    %1030 = vperm.xlu0 %1029, %v1024
    %v1031 = vpop.permute.xlu0 %1030
    %v1033 = vlaneseq
    %v1034 = vshrl.u32 %v1033, 7
    %v1035 = vsub.s32 1, %v1034
    %v1036 = vrot.slane %v91, %v1035
    %v1037 = vmul.f32 %v456, %v1036
    %v1038 = vmul.f32 %v460, %v1036
    %v1039 = vmul.f32 %v464, %v1036
    %v1040 = vmul.f32 %v468, %v1036
    %v1041 = vmul.f32 %v472, %v1036
    %v1042 = vmul.f32 %v476, %v1036
    %v1043 = vmul.f32 %v480, %v1036
    %v1044 = vmul.f32 %v484, %v1036
    %v1045 = vmul.f32 %v488, %v1036
    %v1046 = vmul.f32 %v492, %v1036
    %v1047 = vmul.f32 %v496, %v1036
    %v1048 = vmul.f32 %v500, %v1036
    %v1049 = vmul.f32 %v504, %v1036
    %v1050 = vmul.f32 %v508, %v1036
    %v1051 = vmul.f32 %v512, %v1036
    %v1052 = vmul.f32 %v1027, %v1036
    %v1053 = vmul.f32 %v520, %v1036
    %v1054 = vmul.f32 %v524, %v1036
    %v1055 = vmul.f32 %v528, %v1036
    %v1056 = vmul.f32 %v532, %v1036
    %v1057 = vmul.f32 %v536, %v1036
    %v1058 = vmul.f32 %v540, %v1036
    %v1059 = vmul.f32 %v544, %v1036
    %v1060 = vmul.f32 %v548, %v1036
    %v1061 = vmul.f32 %v552, %v1036
    %v1062 = vmul.f32 %v556, %v1036
    %v1063 = vmul.f32 %v560, %v1036
    %v1064 = vmul.f32 %v564, %v1036
    %v1065 = vmul.f32 %v568, %v1036
    %v1066 = vmul.f32 %v572, %v1036
    %v1067 = vmul.f32 %v576, %v1036
    %v1068 = vmul.f32 %v1031, %v1036
    %v1069 = vadd.f32 %v985, %v1037
    %v1070 = vadd.f32 %v986, %v1038
    %v1071 = vadd.f32 %v987, %v1039
    %v1072 = vadd.f32 %v988, %v1040
    %v1073 = vadd.f32 %v989, %v1041
    %v1074 = vadd.f32 %v990, %v1042
    %v1075 = vadd.f32 %v991, %v1043
    %v1076 = vadd.f32 %v992, %v1044
    %v1077 = vadd.f32 %v993, %v1045
    %v1078 = vadd.f32 %v994, %v1046
    %v1079 = vadd.f32 %v995, %v1047
    %v1080 = vadd.f32 %v996, %v1048
    %v1081 = vadd.f32 %v997, %v1049
    %v1082 = vadd.f32 %v998, %v1050
    %v1083 = vadd.f32 %v999, %v1051
    %v1084 = vadd.f32 %v1000, %v1052
    %v1085 = vadd.f32 %v1001, %v1053
    %v1086 = vadd.f32 %v1002, %v1054
    %v1087 = vadd.f32 %v1003, %v1055
    %v1088 = vadd.f32 %v1004, %v1056
    %v1089 = vadd.f32 %v1005, %v1057
    %v1090 = vadd.f32 %v1006, %v1058
    %v1091 = vadd.f32 %v1007, %v1059
    %v1092 = vadd.f32 %v1008, %v1060
    %v1093 = vadd.f32 %v1009, %v1061
    %v1094 = vadd.f32 %v1010, %v1062
    %v1095 = vadd.f32 %v1011, %v1063
    %v1096 = vadd.f32 %v1012, %v1064
    %v1097 = vadd.f32 %v1013, %v1065
    %v1098 = vadd.f32 %v1014, %v1066
    %v1099 = vadd.f32 %v1015, %v1067
    %v1100 = vadd.f32 %v1016, %v1068
    %v1101 = vrot.slane %v50, 2
    %v1102 = vrot.slane %v51, 2
    %v1103 = vsel %vm646, %v1101, %v1102
    %v1104 = vrot.slane %v86, 2
    %v1105 = vrot.slane %v87, 2
    %v1106 = vsel %vm646, %v1104, %v1105
    %1107 = vset.pattern.permute.xlu0 0
    %1108 = vperm.xlu0 %1107, %v1103
    %v1109 = vpop.permute.xlu0 %1108
    %1111 = vset.pattern.permute.xlu0 0
    %1112 = vperm.xlu0 %1111, %v1106
    %v1113 = vpop.permute.xlu0 %1112
    %v1115 = vlaneseq
    %v1116 = vshrl.u32 %v1115, 7
    %v1117 = vsub.s32 2, %v1116
    %v1118 = vrot.slane %v91, %v1117
    %v1119 = vmul.f32 %v749, %v1118
    %v1120 = vmul.f32 %v753, %v1118
    %v1121 = vmul.f32 %v757, %v1118
    %v1122 = vmul.f32 %v761, %v1118
    %v1123 = vmul.f32 %v765, %v1118
    %v1124 = vmul.f32 %v769, %v1118
    %v1125 = vmul.f32 %v773, %v1118
    %v1126 = vmul.f32 %v777, %v1118
    %v1127 = vmul.f32 %v781, %v1118
    %v1128 = vmul.f32 %v785, %v1118
    %v1129 = vmul.f32 %v789, %v1118
    %v1130 = vmul.f32 %v793, %v1118
    %v1131 = vmul.f32 %v797, %v1118
    %v1132 = vmul.f32 %v801, %v1118
    %v1133 = vmul.f32 %v805, %v1118
    %v1134 = vmul.f32 %v1109, %v1118
    %v1135 = vmul.f32 %v813, %v1118
    %v1136 = vmul.f32 %v817, %v1118
    %v1137 = vmul.f32 %v821, %v1118
    %v1138 = vmul.f32 %v825, %v1118
    %v1139 = vmul.f32 %v829, %v1118
    %v1140 = vmul.f32 %v833, %v1118
    %v1141 = vmul.f32 %v837, %v1118
    %v1142 = vmul.f32 %v841, %v1118
    %v1143 = vmul.f32 %v845, %v1118
    %v1144 = vmul.f32 %v849, %v1118
    %v1145 = vmul.f32 %v853, %v1118
    %v1146 = vmul.f32 %v857, %v1118
    %v1147 = vmul.f32 %v861, %v1118
    %v1148 = vmul.f32 %v865, %v1118
    %v1149 = vmul.f32 %v869, %v1118
    %v1150 = vmul.f32 %v1113, %v1118
    %v1151 = vadd.f32 %v1069, %v1119
    %v1152 = vadd.f32 %v1070, %v1120
    %v1153 = vadd.f32 %v1071, %v1121
    %v1154 = vadd.f32 %v1072, %v1122
    %v1155 = vadd.f32 %v1073, %v1123
    %v1156 = vadd.f32 %v1074, %v1124
    %v1157 = vadd.f32 %v1075, %v1125
    %v1158 = vadd.f32 %v1076, %v1126
    %v1159 = vadd.f32 %v1077, %v1127
    %v1160 = vadd.f32 %v1078, %v1128
    %v1161 = vadd.f32 %v1079, %v1129
    %v1162 = vadd.f32 %v1080, %v1130
    %v1163 = vadd.f32 %v1081, %v1131
    %v1164 = vadd.f32 %v1082, %v1132
    %v1165 = vadd.f32 %v1083, %v1133
    %v1166 = vadd.f32 %v1084, %v1134
    %v1167 = vadd.f32 %v1085, %v1135
    %v1168 = vadd.f32 %v1086, %v1136
    %v1169 = vadd.f32 %v1087, %v1137
    %v1170 = vadd.f32 %v1088, %v1138
    %v1171 = vadd.f32 %v1089, %v1139
    %v1172 = vadd.f32 %v1090, %v1140
    %v1173 = vadd.f32 %v1091, %v1141
    %v1174 = vadd.f32 %v1092, %v1142
    %v1175 = vadd.f32 %v1093, %v1143
    %v1176 = vadd.f32 %v1094, %v1144
    %v1177 = vadd.f32 %v1095, %v1145
    %v1178 = vadd.f32 %v1096, %v1146
    %v1179 = vadd.f32 %v1097, %v1147
    %v1180 = vadd.f32 %v1098, %v1148
    %v1181 = vadd.f32 %v1099, %v1149
    %v1182 = vadd.f32 %v1100, %v1150
    %1184 = vset.pattern.permute.xlu0 0
    %1185 = vperm.xlu0 %1184, %v52
    %v1186 = vpop.permute.xlu0 %1185
    %1189 = vset.pattern.permute.xlu0 0
    %1190 = vperm.xlu0 %1189, %v88
    %v1191 = vpop.permute.xlu0 %1190
    %v1193 = vlaneseq
    %v1194 = vshrl.u32 %v1193, 7
    %v1195 = vsub.s32 0, %v1194
    %v1196 = vrot.slane %v92, %v1195
    %v1197 = vmul.f32 %v106, %v1196
    %v1198 = vmul.f32 %v111, %v1196
    %v1199 = vmul.f32 %v116, %v1196
    %v1200 = vmul.f32 %v121, %v1196
    %v1201 = vmul.f32 %v126, %v1196
    %v1202 = vmul.f32 %v131, %v1196
    %v1203 = vmul.f32 %v136, %v1196
    %v1204 = vmul.f32 %v141, %v1196
    %v1205 = vmul.f32 %v146, %v1196
    %v1206 = vmul.f32 %v151, %v1196
    %v1207 = vmul.f32 %v156, %v1196
    %v1208 = vmul.f32 %v161, %v1196
    %v1209 = vmul.f32 %v166, %v1196
    %v1210 = vmul.f32 %v171, %v1196
    %v1211 = vmul.f32 %v942, %v1196
    %v1212 = vmul.f32 %v1186, %v1196
    %v1213 = vmul.f32 %v186, %v1196
    %v1214 = vmul.f32 %v191, %v1196
    %v1215 = vmul.f32 %v196, %v1196
    %v1216 = vmul.f32 %v201, %v1196
    %v1217 = vmul.f32 %v206, %v1196
    %v1218 = vmul.f32 %v211, %v1196
    %v1219 = vmul.f32 %v216, %v1196
    %v1220 = vmul.f32 %v221, %v1196
    %v1221 = vmul.f32 %v226, %v1196
    %v1222 = vmul.f32 %v231, %v1196
    %v1223 = vmul.f32 %v236, %v1196
    %v1224 = vmul.f32 %v241, %v1196
    %v1225 = vmul.f32 %v246, %v1196
    %v1226 = vmul.f32 %v251, %v1196
    %v1227 = vmul.f32 %v947, %v1196
    %v1228 = vmul.f32 %v1191, %v1196
    %v1229 = vadd.f32 %v1151, %v1197
    %v1230 = vadd.f32 %v1152, %v1198
    %v1231 = vadd.f32 %v1153, %v1199
    %v1232 = vadd.f32 %v1154, %v1200
    %v1233 = vadd.f32 %v1155, %v1201
    %v1234 = vadd.f32 %v1156, %v1202
    %v1235 = vadd.f32 %v1157, %v1203
    %v1236 = vadd.f32 %v1158, %v1204
    %v1237 = vadd.f32 %v1159, %v1205
    %v1238 = vadd.f32 %v1160, %v1206
    %v1239 = vadd.f32 %v1161, %v1207
    %v1240 = vadd.f32 %v1162, %v1208
    %v1241 = vadd.f32 %v1163, %v1209
    %v1242 = vadd.f32 %v1164, %v1210
    %v1243 = vadd.f32 %v1165, %v1211
    %v1244 = vadd.f32 %v1166, %v1212
    %v1245 = vadd.f32 %v1167, %v1213
    %v1246 = vadd.f32 %v1168, %v1214
    %v1247 = vadd.f32 %v1169, %v1215
    %v1248 = vadd.f32 %v1170, %v1216
    %v1249 = vadd.f32 %v1171, %v1217
    %v1250 = vadd.f32 %v1172, %v1218
    %v1251 = vadd.f32 %v1173, %v1219
    %v1252 = vadd.f32 %v1174, %v1220
    %v1253 = vadd.f32 %v1175, %v1221
    %v1254 = vadd.f32 %v1176, %v1222
    %v1255 = vadd.f32 %v1177, %v1223
    %v1256 = vadd.f32 %v1178, %v1224
    %v1257 = vadd.f32 %v1179, %v1225
    %v1258 = vadd.f32 %v1180, %v1226
    %v1259 = vadd.f32 %v1181, %v1227
    %v1260 = vadd.f32 %v1182, %v1228
    %v1263 = vrot.slane %v52, 1
    %v1264 = vrot.slane %v53, 1
    %v1265 = vsel %vm353, %v1263, %v1264
    %v1266 = vrot.slane %v88, 1
    %v1267 = vrot.slane %v89, 1
    %v1268 = vsel %vm353, %v1266, %v1267
    %1269 = vset.pattern.permute.xlu0 0
    %1270 = vperm.xlu0 %1269, %v1265
    %v1271 = vpop.permute.xlu0 %1270
    %1273 = vset.pattern.permute.xlu0 0
    %1274 = vperm.xlu0 %1273, %v1268
    %v1275 = vpop.permute.xlu0 %1274
    %v1277 = vlaneseq
    %v1278 = vshrl.u32 %v1277, 7
    %v1279 = vsub.s32 1, %v1278
    %v1280 = vrot.slane %v92, %v1279
    %v1281 = vmul.f32 %v460, %v1280
    %v1282 = vmul.f32 %v464, %v1280
    %v1283 = vmul.f32 %v468, %v1280
    %v1284 = vmul.f32 %v472, %v1280
    %v1285 = vmul.f32 %v476, %v1280
    %v1286 = vmul.f32 %v480, %v1280
    %v1287 = vmul.f32 %v484, %v1280
    %v1288 = vmul.f32 %v488, %v1280
    %v1289 = vmul.f32 %v492, %v1280
    %v1290 = vmul.f32 %v496, %v1280
    %v1291 = vmul.f32 %v500, %v1280
    %v1292 = vmul.f32 %v504, %v1280
    %v1293 = vmul.f32 %v508, %v1280
    %v1294 = vmul.f32 %v512, %v1280
    %v1295 = vmul.f32 %v1027, %v1280
    %v1296 = vmul.f32 %v1271, %v1280
    %v1297 = vmul.f32 %v524, %v1280
    %v1298 = vmul.f32 %v528, %v1280
    %v1299 = vmul.f32 %v532, %v1280
    %v1300 = vmul.f32 %v536, %v1280
    %v1301 = vmul.f32 %v540, %v1280
    %v1302 = vmul.f32 %v544, %v1280
    %v1303 = vmul.f32 %v548, %v1280
    %v1304 = vmul.f32 %v552, %v1280
    %v1305 = vmul.f32 %v556, %v1280
    %v1306 = vmul.f32 %v560, %v1280
    %v1307 = vmul.f32 %v564, %v1280
    %v1308 = vmul.f32 %v568, %v1280
    %v1309 = vmul.f32 %v572, %v1280
    %v1310 = vmul.f32 %v576, %v1280
    %v1311 = vmul.f32 %v1031, %v1280
    %v1312 = vmul.f32 %v1275, %v1280
    %v1313 = vadd.f32 %v1229, %v1281
    %v1314 = vadd.f32 %v1230, %v1282
    %v1315 = vadd.f32 %v1231, %v1283
    %v1316 = vadd.f32 %v1232, %v1284
    %v1317 = vadd.f32 %v1233, %v1285
    %v1318 = vadd.f32 %v1234, %v1286
    %v1319 = vadd.f32 %v1235, %v1287
    %v1320 = vadd.f32 %v1236, %v1288
    %v1321 = vadd.f32 %v1237, %v1289
    %v1322 = vadd.f32 %v1238, %v1290
    %v1323 = vadd.f32 %v1239, %v1291
    %v1324 = vadd.f32 %v1240, %v1292
    %v1325 = vadd.f32 %v1241, %v1293
    %v1326 = vadd.f32 %v1242, %v1294
    %v1327 = vadd.f32 %v1243, %v1295
    %v1328 = vadd.f32 %v1244, %v1296
    %v1329 = vadd.f32 %v1245, %v1297
    %v1330 = vadd.f32 %v1246, %v1298
    %v1331 = vadd.f32 %v1247, %v1299
    %v1332 = vadd.f32 %v1248, %v1300
    %v1333 = vadd.f32 %v1249, %v1301
    %v1334 = vadd.f32 %v1250, %v1302
    %v1335 = vadd.f32 %v1251, %v1303
    %v1336 = vadd.f32 %v1252, %v1304
    %v1337 = vadd.f32 %v1253, %v1305
    %v1338 = vadd.f32 %v1254, %v1306
    %v1339 = vadd.f32 %v1255, %v1307
    %v1340 = vadd.f32 %v1256, %v1308
    %v1341 = vadd.f32 %v1257, %v1309
    %v1342 = vadd.f32 %v1258, %v1310
    %v1343 = vadd.f32 %v1259, %v1311
    %v1344 = vadd.f32 %v1260, %v1312
    %v1345 = vrot.slane %v52, 2
    %v1346 = vrot.slane %v53, 2
    %v1347 = vsel %vm646, %v1345, %v1346
    %v1348 = vrot.slane %v88, 2
    %v1349 = vrot.slane %v89, 2
    %v1350 = vsel %vm646, %v1348, %v1349
    %1351 = vset.pattern.permute.xlu0 0
    %1352 = vperm.xlu0 %1351, %v1347
    %v1353 = vpop.permute.xlu0 %1352
    %1355 = vset.pattern.permute.xlu0 0
    %1356 = vperm.xlu0 %1355, %v1350
    %v1357 = vpop.permute.xlu0 %1356
    %v1359 = vlaneseq
    %v1360 = vshrl.u32 %v1359, 7
    %v1361 = vsub.s32 2, %v1360
    %v1362 = vrot.slane %v92, %v1361
    %v1363 = vmul.f32 %v753, %v1362
    %v1364 = vmul.f32 %v757, %v1362
    %v1365 = vmul.f32 %v761, %v1362
    %v1366 = vmul.f32 %v765, %v1362
    %v1367 = vmul.f32 %v769, %v1362
    %v1368 = vmul.f32 %v773, %v1362
    %v1369 = vmul.f32 %v777, %v1362
    %v1370 = vmul.f32 %v781, %v1362
    %v1371 = vmul.f32 %v785, %v1362
    %v1372 = vmul.f32 %v789, %v1362
    %v1373 = vmul.f32 %v793, %v1362
    %v1374 = vmul.f32 %v797, %v1362
    %v1375 = vmul.f32 %v801, %v1362
    %v1376 = vmul.f32 %v805, %v1362
    %v1377 = vmul.f32 %v1109, %v1362
    %v1378 = vmul.f32 %v1353, %v1362
    %v1379 = vmul.f32 %v817, %v1362
    %v1380 = vmul.f32 %v821, %v1362
    %v1381 = vmul.f32 %v825, %v1362
    %v1382 = vmul.f32 %v829, %v1362
    %v1383 = vmul.f32 %v833, %v1362
    %v1384 = vmul.f32 %v837, %v1362
    %v1385 = vmul.f32 %v841, %v1362
    %v1386 = vmul.f32 %v845, %v1362
    %v1387 = vmul.f32 %v849, %v1362
    %v1388 = vmul.f32 %v853, %v1362
    %v1389 = vmul.f32 %v857, %v1362
    %v1390 = vmul.f32 %v861, %v1362
    %v1391 = vmul.f32 %v865, %v1362
    %v1392 = vmul.f32 %v869, %v1362
    %v1393 = vmul.f32 %v1113, %v1362
    %v1394 = vmul.f32 %v1357, %v1362
    %v1395 = vadd.f32 %v1313, %v1363
    %v1396 = vadd.f32 %v1314, %v1364
    %v1397 = vadd.f32 %v1315, %v1365
    %v1398 = vadd.f32 %v1316, %v1366
    %v1399 = vadd.f32 %v1317, %v1367
    %v1400 = vadd.f32 %v1318, %v1368
    %v1401 = vadd.f32 %v1319, %v1369
    %v1402 = vadd.f32 %v1320, %v1370
    %v1403 = vadd.f32 %v1321, %v1371
    %v1404 = vadd.f32 %v1322, %v1372
    %v1405 = vadd.f32 %v1323, %v1373
    %v1406 = vadd.f32 %v1324, %v1374
    %v1407 = vadd.f32 %v1325, %v1375
    %v1408 = vadd.f32 %v1326, %v1376
    %v1409 = vadd.f32 %v1327, %v1377
    %v1410 = vadd.f32 %v1328, %v1378
    %v1411 = vadd.f32 %v1329, %v1379
    %v1412 = vadd.f32 %v1330, %v1380
    %v1413 = vadd.f32 %v1331, %v1381
    %v1414 = vadd.f32 %v1332, %v1382
    %v1415 = vadd.f32 %v1333, %v1383
    %v1416 = vadd.f32 %v1334, %v1384
    %v1417 = vadd.f32 %v1335, %v1385
    %v1418 = vadd.f32 %v1336, %v1386
    %v1419 = vadd.f32 %v1337, %v1387
    %v1420 = vadd.f32 %v1338, %v1388
    %v1421 = vadd.f32 %v1339, %v1389
    %v1422 = vadd.f32 %v1340, %v1390
    %v1423 = vadd.f32 %v1341, %v1391
    %v1424 = vadd.f32 %v1342, %v1392
    %v1425 = vadd.f32 %v1343, %v1393
    %v1426 = vadd.f32 %v1344, %v1394
    %vm1427 = vcmask 130048
    %v1428 = vsel %vm1427, %v1395, 0.0
    %v1429 = vsel %vm1427, %v1396, 0.0
    %v1430 = vadd.f32 %v1428, %v1429
    %v1431 = vsel %vm1427, %v1397, 0.0
    %v1432 = vadd.f32 %v1430, %v1431
    %v1433 = vsel %vm1427, %v1398, 0.0
    %v1434 = vadd.f32 %v1432, %v1433
    %v1435 = vsel %vm1427, %v1399, 0.0
    %v1436 = vadd.f32 %v1434, %v1435
    %v1437 = vsel %vm1427, %v1400, 0.0
    %v1438 = vadd.f32 %v1436, %v1437
    %v1439 = vsel %vm1427, %v1401, 0.0
    %v1440 = vadd.f32 %v1438, %v1439
    %v1441 = vsel %vm1427, %v1402, 0.0
    %v1442 = vadd.f32 %v1440, %v1441
    %v1443 = vsel %vm1427, %v1403, 0.0
    %v1444 = vadd.f32 %v1442, %v1443
    %v1445 = vsel %vm1427, %v1404, 0.0
    %v1446 = vadd.f32 %v1444, %v1445
    %v1447 = vsel %vm1427, %v1405, 0.0
    %v1448 = vadd.f32 %v1446, %v1447
    %v1449 = vsel %vm1427, %v1406, 0.0
    %v1450 = vadd.f32 %v1448, %v1449
    %v1451 = vsel %vm1427, %v1407, 0.0
    %v1452 = vadd.f32 %v1450, %v1451
    %v1453 = vsel %vm1427, %v1408, 0.0
    %v1454 = vadd.f32 %v1452, %v1453
    %v1455 = vsel %vm1427, %v1409, 0.0
    %v1456 = vadd.f32 %v1454, %v1455
    %v1457 = vsel %vm1427, %v1410, 0.0
    %v1458 = vadd.f32 %v1456, %v1457
    %v1459 = vsel %vm1427, %v1411, 0.0
    %v1460 = vadd.f32 %v1458, %v1459
    %v1461 = vsel %vm1427, %v1412, 0.0
    %v1462 = vadd.f32 %v1460, %v1461
    %v1463 = vsel %vm1427, %v1413, 0.0
    %v1464 = vadd.f32 %v1462, %v1463
    %v1465 = vsel %vm1427, %v1414, 0.0
    %v1466 = vadd.f32 %v1464, %v1465
    %v1467 = vsel %vm1427, %v1415, 0.0
    %v1468 = vadd.f32 %v1466, %v1467
    %v1469 = vsel %vm1427, %v1416, 0.0
    %v1470 = vadd.f32 %v1468, %v1469
    %v1471 = vsel %vm1427, %v1417, 0.0
    %v1472 = vadd.f32 %v1470, %v1471
    %v1473 = vsel %vm1427, %v1418, 0.0
    %v1474 = vadd.f32 %v1472, %v1473
    %v1475 = vsel %vm1427, %v1419, 0.0
    %v1476 = vadd.f32 %v1474, %v1475
    %v1477 = vsel %vm1427, %v1420, 0.0
    %v1478 = vadd.f32 %v1476, %v1477
    %v1479 = vsel %vm1427, %v1421, 0.0
    %v1480 = vadd.f32 %v1478, %v1479
    %v1481 = vsel %vm1427, %v1422, 0.0
    %v1482 = vadd.f32 %v1480, %v1481
    %v1483 = vsel %vm1427, %v1423, 0.0
    %v1484 = vadd.f32 %v1482, %v1483
    %v1485 = vsel %vm1427, %v1424, 0.0
    %v1486 = vadd.f32 %v1484, %v1485
    %v1487 = vsel %vm1427, %v1425, 0.0
    %v1488 = vadd.f32 %v1486, %v1487
    %v1489 = vsel %vm1427, %v1426, 0.0
    %v1490 = vadd.f32 %v1488, %v1489
    %v1491 = vrot.slane %v1490, 4
    %v1492 = vadd.f32 %v1490, %v1491
    %v1493 = vrot.slane %v1492, 2
    %v1494 = vadd.f32 %v1492, %v1493
    %v1495 = vrot.slane %v1494, 1
    %v1496 = vadd.f32 %v1494, %v1495
    %v1497 = vrcp.pop 256.0
    %v1498 = vmul.f32 %v1496, %v1497
    %v1499 = vsub.f32 %v1395, %v1498
    %v1500 = vsub.f32 %v1396, %v1498
    %v1501 = vsub.f32 %v1397, %v1498
    %v1502 = vsub.f32 %v1398, %v1498
    %v1503 = vsub.f32 %v1399, %v1498
    %v1504 = vsub.f32 %v1400, %v1498
    %v1505 = vsub.f32 %v1401, %v1498
    %v1506 = vsub.f32 %v1402, %v1498
    %v1507 = vsub.f32 %v1403, %v1498
    %v1508 = vsub.f32 %v1404, %v1498
    %v1509 = vsub.f32 %v1405, %v1498
    %v1510 = vsub.f32 %v1406, %v1498
    %v1511 = vsub.f32 %v1407, %v1498
    %v1512 = vsub.f32 %v1408, %v1498
    %v1513 = vsub.f32 %v1409, %v1498
    %v1514 = vsub.f32 %v1410, %v1498
    %v1515 = vsub.f32 %v1411, %v1498
    %v1516 = vsub.f32 %v1412, %v1498
    %v1517 = vsub.f32 %v1413, %v1498
    %v1518 = vsub.f32 %v1414, %v1498
    %v1519 = vsub.f32 %v1415, %v1498
    %v1520 = vsub.f32 %v1416, %v1498
    %v1521 = vsub.f32 %v1417, %v1498
    %v1522 = vsub.f32 %v1418, %v1498
    %v1523 = vsub.f32 %v1419, %v1498
    %v1524 = vsub.f32 %v1420, %v1498
    %v1525 = vsub.f32 %v1421, %v1498
    %v1526 = vsub.f32 %v1422, %v1498
    %v1527 = vsub.f32 %v1423, %v1498
    %v1528 = vsub.f32 %v1424, %v1498
    %v1529 = vsub.f32 %v1425, %v1498
    %v1530 = vsub.f32 %v1426, %v1498
    %v1531 = vmul.f32 %v1499, %v1499
    %v1532 = vmul.f32 %v1500, %v1500
    %v1533 = vmul.f32 %v1501, %v1501
    %v1534 = vmul.f32 %v1502, %v1502
    %v1535 = vmul.f32 %v1503, %v1503
    %v1536 = vmul.f32 %v1504, %v1504
    %v1537 = vmul.f32 %v1505, %v1505
    %v1538 = vmul.f32 %v1506, %v1506
    %v1539 = vmul.f32 %v1507, %v1507
    %v1540 = vmul.f32 %v1508, %v1508
    %v1541 = vmul.f32 %v1509, %v1509
    %v1542 = vmul.f32 %v1510, %v1510
    %v1543 = vmul.f32 %v1511, %v1511
    %v1544 = vmul.f32 %v1512, %v1512
    %v1545 = vmul.f32 %v1513, %v1513
    %v1546 = vmul.f32 %v1514, %v1514
    %v1547 = vmul.f32 %v1515, %v1515
    %v1548 = vmul.f32 %v1516, %v1516
    %v1549 = vmul.f32 %v1517, %v1517
    %v1550 = vmul.f32 %v1518, %v1518
    %v1551 = vmul.f32 %v1519, %v1519
    %v1552 = vmul.f32 %v1520, %v1520
    %v1553 = vmul.f32 %v1521, %v1521
    %v1554 = vmul.f32 %v1522, %v1522
    %v1555 = vmul.f32 %v1523, %v1523
    %v1556 = vmul.f32 %v1524, %v1524
    %v1557 = vmul.f32 %v1525, %v1525
    %v1558 = vmul.f32 %v1526, %v1526
    %v1559 = vmul.f32 %v1527, %v1527
    %v1560 = vmul.f32 %v1528, %v1528
    %v1561 = vmul.f32 %v1529, %v1529
    %v1562 = vmul.f32 %v1530, %v1530
    %v1563 = vsel %vm1427, %v1531, 0.0
    %v1564 = vsel %vm1427, %v1532, 0.0
    %v1565 = vadd.f32 %v1563, %v1564
    %v1566 = vsel %vm1427, %v1533, 0.0
    %v1567 = vadd.f32 %v1565, %v1566
    %v1568 = vsel %vm1427, %v1534, 0.0
    %v1569 = vadd.f32 %v1567, %v1568
    %v1570 = vsel %vm1427, %v1535, 0.0
    %v1571 = vadd.f32 %v1569, %v1570
    %v1572 = vsel %vm1427, %v1536, 0.0
    %v1573 = vadd.f32 %v1571, %v1572
    %v1574 = vsel %vm1427, %v1537, 0.0
    %v1575 = vadd.f32 %v1573, %v1574
    %v1576 = vsel %vm1427, %v1538, 0.0
    %v1577 = vadd.f32 %v1575, %v1576
    %v1578 = vsel %vm1427, %v1539, 0.0
    %v1579 = vadd.f32 %v1577, %v1578
    %v1580 = vsel %vm1427, %v1540, 0.0
    %v1581 = vadd.f32 %v1579, %v1580
    %v1582 = vsel %vm1427, %v1541, 0.0
    %v1583 = vadd.f32 %v1581, %v1582
    %v1584 = vsel %vm1427, %v1542, 0.0
    %v1585 = vadd.f32 %v1583, %v1584
    %v1586 = vsel %vm1427, %v1543, 0.0
    %v1587 = vadd.f32 %v1585, %v1586
    %v1588 = vsel %vm1427, %v1544, 0.0
    %v1589 = vadd.f32 %v1587, %v1588
    %v1590 = vsel %vm1427, %v1545, 0.0
    %v1591 = vadd.f32 %v1589, %v1590
    %v1592 = vsel %vm1427, %v1546, 0.0
    %v1593 = vadd.f32 %v1591, %v1592
    %v1594 = vsel %vm1427, %v1547, 0.0
    %v1595 = vadd.f32 %v1593, %v1594
    %v1596 = vsel %vm1427, %v1548, 0.0
    %v1597 = vadd.f32 %v1595, %v1596
    %v1598 = vsel %vm1427, %v1549, 0.0
    %v1599 = vadd.f32 %v1597, %v1598
    %v1600 = vsel %vm1427, %v1550, 0.0
    %v1601 = vadd.f32 %v1599, %v1600
    %v1602 = vsel %vm1427, %v1551, 0.0
    %v1603 = vadd.f32 %v1601, %v1602
    %v1604 = vsel %vm1427, %v1552, 0.0
    %v1605 = vadd.f32 %v1603, %v1604
    %v1606 = vsel %vm1427, %v1553, 0.0
    %v1607 = vadd.f32 %v1605, %v1606
    %v1608 = vsel %vm1427, %v1554, 0.0
    %v1609 = vadd.f32 %v1607, %v1608
    %v1610 = vsel %vm1427, %v1555, 0.0
    %v1611 = vadd.f32 %v1609, %v1610
    %v1612 = vsel %vm1427, %v1556, 0.0
    %v1613 = vadd.f32 %v1611, %v1612
    %v1614 = vsel %vm1427, %v1557, 0.0
    %v1615 = vadd.f32 %v1613, %v1614
    %v1616 = vsel %vm1427, %v1558, 0.0
    %v1617 = vadd.f32 %v1615, %v1616
    %v1618 = vsel %vm1427, %v1559, 0.0
    %v1619 = vadd.f32 %v1617, %v1618
    %v1620 = vsel %vm1427, %v1560, 0.0
    %v1621 = vadd.f32 %v1619, %v1620
    %v1622 = vsel %vm1427, %v1561, 0.0
    %v1623 = vadd.f32 %v1621, %v1622
    %v1624 = vsel %vm1427, %v1562, 0.0
    %v1625 = vadd.f32 %v1623, %v1624
    %v1626 = vrot.slane %v1625, 4
    %v1627 = vadd.f32 %v1625, %v1626
    %v1628 = vrot.slane %v1627, 2
    %v1629 = vadd.f32 %v1627, %v1628
    %v1630 = vrot.slane %v1629, 1
    %v1631 = vadd.f32 %v1629, %v1630
    %v1632 = vmul.f32 %v1631, %v1497
    %v1633 = vadd.f32 %v1632, 1e-05
    %v1634 = vrsqrt.pop %v1633
    %v1635 = vmul.f32 %v1499, %v1634
    %v1636 = vmul.f32 %v1500, %v1634
    %v1637 = vmul.f32 %v1501, %v1634
    %v1638 = vmul.f32 %v1502, %v1634
    %v1639 = vmul.f32 %v1503, %v1634
    %v1640 = vmul.f32 %v1504, %v1634
    %v1641 = vmul.f32 %v1505, %v1634
    %v1642 = vmul.f32 %v1506, %v1634
    %v1643 = vmul.f32 %v1507, %v1634
    %v1644 = vmul.f32 %v1508, %v1634
    %v1645 = vmul.f32 %v1509, %v1634
    %v1646 = vmul.f32 %v1510, %v1634
    %v1647 = vmul.f32 %v1511, %v1634
    %v1648 = vmul.f32 %v1512, %v1634
    %v1649 = vmul.f32 %v1513, %v1634
    %v1650 = vmul.f32 %v1514, %v1634
    %v1651 = vmul.f32 %v1515, %v1634
    %v1652 = vmul.f32 %v1516, %v1634
    %v1653 = vmul.f32 %v1517, %v1634
    %v1654 = vmul.f32 %v1518, %v1634
    %v1655 = vmul.f32 %v1519, %v1634
    %v1656 = vmul.f32 %v1520, %v1634
    %v1657 = vmul.f32 %v1521, %v1634
    %v1658 = vmul.f32 %v1522, %v1634
    %v1659 = vmul.f32 %v1523, %v1634
    %v1660 = vmul.f32 %v1524, %v1634
    %v1661 = vmul.f32 %v1525, %v1634
    %v1662 = vmul.f32 %v1526, %v1634
    %v1663 = vmul.f32 %v1527, %v1634
    %v1664 = vmul.f32 %v1528, %v1634
    %v1665 = vmul.f32 %v1529, %v1634
    %v1666 = vmul.f32 %v1530, %v1634
    %v1667 = vld [vmem:[%s2] sm:$0x1]
    %v1669 = vlaneseq
    %v1670 = vshrl.u32 %v1669, 7
    %v1671 = vsub.s32 0, %v1670
    %v1672 = vrot.slane %v1667, %v1671
    %v1674 = vmul.f32 %v1635, %v1672
    %v1675 = vmul.f32 %v1636, %v1672
    %v1676 = vmul.f32 %v1637, %v1672
    %v1677 = vmul.f32 %v1638, %v1672
    %v1678 = vmul.f32 %v1639, %v1672
    %v1679 = vmul.f32 %v1640, %v1672
    %v1680 = vmul.f32 %v1641, %v1672
    %v1681 = vmul.f32 %v1642, %v1672
    %v1682 = vmul.f32 %v1643, %v1672
    %v1683 = vmul.f32 %v1644, %v1672
    %v1684 = vmul.f32 %v1645, %v1672
    %v1685 = vmul.f32 %v1646, %v1672
    %v1686 = vmul.f32 %v1647, %v1672
    %v1687 = vmul.f32 %v1648, %v1672
    %v1688 = vmul.f32 %v1649, %v1672
    %v1689 = vmul.f32 %v1650, %v1672
    %v1690 = vmul.f32 %v1651, %v1672
    %v1691 = vmul.f32 %v1652, %v1672
    %v1692 = vmul.f32 %v1653, %v1672
    %v1693 = vmul.f32 %v1654, %v1672
    %v1694 = vmul.f32 %v1655, %v1672
    %v1695 = vmul.f32 %v1656, %v1672
    %v1696 = vmul.f32 %v1657, %v1672
    %v1697 = vmul.f32 %v1658, %v1672
    %v1698 = vmul.f32 %v1659, %v1672
    %v1699 = vmul.f32 %v1660, %v1672
    %v1700 = vmul.f32 %v1661, %v1672
    %v1701 = vmul.f32 %v1662, %v1672
    %v1702 = vmul.f32 %v1663, %v1672
    %v1703 = vmul.f32 %v1664, %v1672
    %v1704 = vmul.f32 %v1665, %v1672
    %v1705 = vmul.f32 %v1666, %v1672
    %v1706 = vld [vmem:[%s3] sm:$0x1]
    %v1708 = vlaneseq
    %v1709 = vshrl.u32 %v1708, 7
    %v1710 = vsub.s32 0, %v1709
    %v1711 = vrot.slane %v1706, %v1710
    %v1713 = vadd.f32 %v1674, %v1711
    %v1714 = vadd.f32 %v1675, %v1711
    %v1715 = vadd.f32 %v1676, %v1711
    %v1716 = vadd.f32 %v1677, %v1711
    %v1717 = vadd.f32 %v1678, %v1711
    %v1718 = vadd.f32 %v1679, %v1711
    %v1719 = vadd.f32 %v1680, %v1711
    %v1720 = vadd.f32 %v1681, %v1711
    %v1721 = vadd.f32 %v1682, %v1711
    %v1722 = vadd.f32 %v1683, %v1711
    %v1723 = vadd.f32 %v1684, %v1711
    %v1724 = vadd.f32 %v1685, %v1711
    %v1725 = vadd.f32 %v1686, %v1711
    %v1726 = vadd.f32 %v1687, %v1711
    %v1727 = vadd.f32 %v1688, %v1711
    %v1728 = vadd.f32 %v1689, %v1711
    %v1729 = vadd.f32 %v1690, %v1711
    %v1730 = vadd.f32 %v1691, %v1711
    %v1731 = vadd.f32 %v1692, %v1711
    %v1732 = vadd.f32 %v1693, %v1711
    %v1733 = vadd.f32 %v1694, %v1711
    %v1734 = vadd.f32 %v1695, %v1711
    %v1735 = vadd.f32 %v1696, %v1711
    %v1736 = vadd.f32 %v1697, %v1711
    %v1737 = vadd.f32 %v1698, %v1711
    %v1738 = vadd.f32 %v1699, %v1711
    %v1739 = vadd.f32 %v1700, %v1711
    %v1740 = vadd.f32 %v1701, %v1711
    %v1741 = vadd.f32 %v1702, %v1711
    %v1742 = vadd.f32 %v1703, %v1711
    %v1743 = vadd.f32 %v1704, %v1711
    %v1744 = vadd.f32 %v1705, %v1711
    %v1745 = vmax.f32 %v1713, 0.0
    %v1746 = vmax.f32 %v1714, 0.0
    %v1747 = vmax.f32 %v1715, 0.0
    %v1748 = vmax.f32 %v1716, 0.0
    %v1749 = vmax.f32 %v1717, 0.0
    %v1750 = vmax.f32 %v1718, 0.0
    %v1751 = vmax.f32 %v1719, 0.0
    %v1752 = vmax.f32 %v1720, 0.0
    %v1753 = vmax.f32 %v1721, 0.0
    %v1754 = vmax.f32 %v1722, 0.0
    %v1755 = vmax.f32 %v1723, 0.0
    %v1756 = vmax.f32 %v1724, 0.0
    %v1757 = vmax.f32 %v1725, 0.0
    %v1758 = vmax.f32 %v1726, 0.0
    %v1759 = vmax.f32 %v1727, 0.0
    %v1760 = vmax.f32 %v1728, 0.0
    %v1761 = vmax.f32 %v1729, 0.0
    %v1762 = vmax.f32 %v1730, 0.0
    %v1763 = vmax.f32 %v1731, 0.0
    %v1764 = vmax.f32 %v1732, 0.0
    %v1765 = vmax.f32 %v1733, 0.0
    %v1766 = vmax.f32 %v1734, 0.0
    %v1767 = vmax.f32 %v1735, 0.0
    %v1768 = vmax.f32 %v1736, 0.0
    %v1769 = vmax.f32 %v1737, 0.0
    %v1770 = vmax.f32 %v1738, 0.0
    %v1771 = vmax.f32 %v1739, 0.0
    %v1772 = vmax.f32 %v1740, 0.0
    %v1773 = vmax.f32 %v1741, 0.0
    %v1774 = vmax.f32 %v1742, 0.0
    %v1775 = vmax.f32 %v1743, 0.0
    %v1776 = vmax.f32 %v1744, 0.0
    %1777 = vst.msk [vmem:[#allocation2] sm:$0xff] %vm1427, %v1745
    %1778 = vst.msk [vmem:[#allocation2 + $0x8] sm:$0xff] %vm1427, %v1746
    %1779 = vst.msk [vmem:[#allocation2 + $0x10] sm:$0xff] %vm1427, %v1747
    %1780 = vst.msk [vmem:[#allocation2 + $0x18] sm:$0xff] %vm1427, %v1748
    %1781 = vst.msk [vmem:[#allocation2 + $0x20] sm:$0xff] %vm1427, %v1749
    %1782 = vst.msk [vmem:[#allocation2 + $0x28] sm:$0xff] %vm1427, %v1750
    %1783 = vst.msk [vmem:[#allocation2 + $0x30] sm:$0xff] %vm1427, %v1751
    %1784 = vst.msk [vmem:[#allocation2 + $0x38] sm:$0xff] %vm1427, %v1752
    %1785 = vst.msk [vmem:[#allocation2 + $0x40] sm:$0xff] %vm1427, %v1753
    %1786 = vst.msk [vmem:[#allocation2 + $0x48] sm:$0xff] %vm1427, %v1754
    %1787 = vst.msk [vmem:[#allocation2 + $0x50] sm:$0xff] %vm1427, %v1755
    %1788 = vst.msk [vmem:[#allocation2 + $0x58] sm:$0xff] %vm1427, %v1756
    %1789 = vst.msk [vmem:[#allocation2 + $0x60] sm:$0xff] %vm1427, %v1757
    %1790 = vst.msk [vmem:[#allocation2 + $0x68] sm:$0xff] %vm1427, %v1758
    %1791 = vst.msk [vmem:[#allocation2 + $0x70] sm:$0xff] %vm1427, %v1759
    %1792 = vst.msk [vmem:[#allocation2 + $0x78] sm:$0xff] %vm1427, %v1760
    %1793 = vst.msk [vmem:[#allocation2 + $0x80] sm:$0xff] %vm1427, %v1761
    %1794 = vst.msk [vmem:[#allocation2 + $0x88] sm:$0xff] %vm1427, %v1762
    %1795 = vst.msk [vmem:[#allocation2 + $0x90] sm:$0xff] %vm1427, %v1763
    %1796 = vst.msk [vmem:[#allocation2 + $0x98] sm:$0xff] %vm1427, %v1764
    %1797 = vst.msk [vmem:[#allocation2 + $0xa0] sm:$0xff] %vm1427, %v1765
    %1798 = vst.msk [vmem:[#allocation2 + $0xa8] sm:$0xff] %vm1427, %v1766
    %1799 = vst.msk [vmem:[#allocation2 + $0xb0] sm:$0xff] %vm1427, %v1767
    %1800 = vst.msk [vmem:[#allocation2 + $0xb8] sm:$0xff] %vm1427, %v1768
    %1801 = vst.msk [vmem:[#allocation2 + $0xc0] sm:$0xff] %vm1427, %v1769
    %1802 = vst.msk [vmem:[#allocation2 + $0xc8] sm:$0xff] %vm1427, %v1770
    %1803 = vst.msk [vmem:[#allocation2 + $0xd0] sm:$0xff] %vm1427, %v1771
    %1804 = vst.msk [vmem:[#allocation2 + $0xd8] sm:$0xff] %vm1427, %v1772
    %1805 = vst.msk [vmem:[#allocation2 + $0xe0] sm:$0xff] %vm1427, %v1773
    %1806 = vst.msk [vmem:[#allocation2 + $0xe8] sm:$0xff] %vm1427, %v1774
    %1807 = vst.msk [vmem:[#allocation2 + $0xf0] sm:$0xff] %vm1427, %v1775
    %1808 = vst.msk [vmem:[#allocation2 + $0xf8] sm:$0xff] %vm1427, %v1776
    // Predicated region
    $region18: #{tpu_custom_call.1} parent=1 // pred_check
      _
    $region19: #{tpu_custom_call.1} parent=1 // pred_check_branch
      %1810 = sbr.rel (0) target = $region21
    $region20: #{tpu_custom_call.1} parent=1 // pred_region
      %s1812 = ssub.s32 4096, 4096
      %1813 = vsyncadd [#allocation3], %s1812
      %s1814 = sshll.u32 [#allocation2], 4
      %s1815 = int_to_ptr.vmem [resolvable:$true] %s1814
      %1820 = dma.vmem_to_hbm [thread:$0]  %s1815, 4096, %s4, [#allocation3], 128, 128, 8
    $region21: #{tpu_custom_call.1} parent=1 // pred_fallthru
      _
    // Predicated region
    $region22: #{tpu_custom_call.1} parent=1 // pred_check
      _
    $region23: #{tpu_custom_call.1} parent=1 // pred_check_branch
      %1822 = sbr.rel (0) target = $region25
    $region24: #{tpu_custom_call.1} parent=1 // pred_region
      %1823 = dma.done [#allocation3], 4096
    $region25: #{tpu_custom_call.1} parent=1 // pred_fallthru
      _
    %1824 = vsyncpa [#allocation3], 1

</llo_original>
